<compile_context>
chip_gen: v6e
topology: v6e:2x2x1
jax: 0.10.0
libtpu: 0.0.40
codegen_flags: <defaults>
</compile_context>

<pallas_src>
from functools import partial

import jax
import jax.numpy as jnp
from jax.experimental import pallas as pl
from jax.experimental.pallas import tpu as pltpu


# =============================================================================
# Fused kernel.  grid = (2, T): axis 0 = phase (0: conv + BN stats, 1: BN+ReLU+
# conv1x1+softmax), axis 1 = row tile over the N*D*H rows of the packed
# (rows, W*Cout=128) NDHWC layout.  Both axes are serial ("arbitrary"):
# phase 1 needs the global batch statistics produced by all of phase 0.
# =============================================================================
def _fused_output_kernel(x_ref, wbig_ref, b1_ref, fold_ref, gamma_ref, beta_ref,
                         w2_ref, b2_ref, ones_ref, o_ref,
                         y_sc, sum_sc, sq_sc, *, m_count, eps):
    phase = pl.program_id(0)
    t = pl.program_id(1)
    tm = o_ref.shape[0]
    row0 = pl.multiple_of(t * tm, 8)

    @pl.when(phase == 0)
    def _conv_and_stats():
        @pl.when(t == 0)
        def _init():
            sum_sc[...] = jnp.zeros_like(sum_sc)
            sq_sc[...] = jnp.zeros_like(sq_sc)

        # im2col conv: one bf16 MXU dot, K = 9*W*Cin, f32 accumulation.
        y = jnp.dot(x_ref[...], wbig_ref[...],
                    preferred_element_type=jnp.float32) + b1_ref[...]
        y_sc[pl.ds(row0, tm), :] = y                       # stays resident in VMEM
        sum_sc[...] += jnp.sum(y, axis=0, keepdims=True)   # per-(w,c) lane partials
        sq_sc[...] += jnp.sum(y * y, axis=0, keepdims=True)

    @pl.when(phase == 1)
    def _bn_relu_conv1x1_softmax():
        # Fold the per-(w,c) lane statistics to per-channel stats broadcast back to
        # all 128 lanes (fold_ref = kron(ones(W,W), eye(C))).
        s_c = jnp.dot(sum_sc[...], fold_ref[...], preferred_element_type=jnp.float32)
        q_c = jnp.dot(sq_sc[...], fold_ref[...], preferred_element_type=jnp.float32)
        mean = s_c * (1.0 / m_count)
        var = q_c * (1.0 / m_count) - mean * mean          # biased variance (BN training norm)
        scale = gamma_ref[...] * jax.lax.rsqrt(var + eps)
        shift = beta_ref[...] - mean * scale

        y = y_sc[pl.ds(row0, tm), :]
        h = jnp.maximum(y * scale + shift, 0.0)            # BN + ReLU (f32, VPU)

        # 1x1x1 conv over channels == block-diagonal 128x128 bf16 MXU matmul.
        z = jnp.dot(h.astype(jnp.bfloat16), w2_ref[...],
                    preferred_element_type=jnp.float32) + b2_ref[...]

        # Channel softmax on the lane-dense layout.  The 128-lane row max is constant
        # within each channel group so it is a valid stability shift; per-group sums are
        # broadcast to their group by the block-diagonal ones matmul (kept f32).
        # (A per-8-lane-group max would only matter for logit spreads > ~87.)
        z = z - jnp.max(z, axis=-1, keepdims=True)
        p = jnp.exp(z)
        denom = jnp.dot(p, ones_ref[...], preferred_element_type=jnp.float32)
        o_ref[...] = p * pl.reciprocal(denom, approx=True)


# =============================================================================
# Weight packing -- computed ONCE per weight set (hoisted off the forward path).
# =============================================================================
def pack_output_params(w1_oidhw, b1, gamma, beta, w2_oidhw, b2, *, W):
    Cout, Cin = int(w1_oidhw.shape[0]), int(w1_oidhw.shape[1])
    L = W * Cout
    assert L == 128, "choose shapes with W * out_channels == 128 (lane-dense packing)"

    w1 = jnp.transpose(w1_oidhw, (2, 3, 4, 1, 0)).astype(jnp.float32)  # OIDHW -> DHWIO

    # Banded weight: rows grouped by (kd,kh); within a group,
    # G[(wi,ci),(wo,co)] = w1[kd,kh, wi-wo+1, ci, co]  (zero outside the 3-wide band
    # -> implicit SAME padding along W).
    blocks = []
    for kd in range(3):
        for kh in range(3):
            g = jnp.zeros((W * Cin, L), jnp.float32)
            for kw in range(3):
                g = g + jnp.kron(jnp.eye(W, W, k=1 - kw, dtype=jnp.float32),
                                 w1[kd, kh, kw])
            blocks.append(g)
    wbig = jnp.concatenate(blocks, axis=0).astype(jnp.bfloat16)        # (9*W*Cin, 128)

    b1_l = jnp.tile(b1.astype(jnp.float32), (W,)).reshape(1, L)
    gamma_l = jnp.tile(gamma.astype(jnp.float32), (W,)).reshape(1, L)
    beta_l = jnp.tile(beta.astype(jnp.float32), (W,)).reshape(1, L)
    b2_l = jnp.tile(b2.astype(jnp.float32), (W,)).reshape(1, L)

    # Per-channel stat fold (sum over the W lane groups, broadcast back to all lanes).
    fold = jnp.kron(jnp.ones((W, W), jnp.float32), jnp.eye(Cout, dtype=jnp.float32))
    # 1x1x1 conv as a block-diagonal (128,128) matrix; softmax group-sum matrix likewise.
    w2_mat = w2_oidhw[:, :, 0, 0, 0].T.astype(jnp.float32)             # (C_in, C_out)
    w2_bd = jnp.kron(jnp.eye(W, dtype=jnp.float32), w2_mat).astype(jnp.bfloat16)
    ones_bd = jnp.kron(jnp.eye(W, dtype=jnp.float32), jnp.ones((Cout, Cout), jnp.float32))

    return dict(wbig=wbig, b1=b1_l, fold=fold, gamma=gamma_l, beta=beta_l,
                w2=w2_bd, b2=b2_l, ones=ones_bd)


# =============================================================================
# Module equivalent of Output.forward (fused, single pallas_call).
# =============================================================================
@partial(jax.jit, static_argnames=("eps",))
def output_forward(x_ncdhw, params, eps=1e-5):
    x = jnp.transpose(x_ncdhw, (0, 2, 3, 4, 1)).astype(jnp.float32)    # NCDHW -> NDHWC
    N, D, H, W, Cin = x.shape
    L = params["wbig"].shape[1]                                        # = W*Cout = 128
    Cout = L // W
    M = N * D * H
    K = 9 * W * Cin

    # Wrapper-side im2col over (kd, kh); W-axis SAME padding lives in the banded weight.
    xp = jnp.pad(x, ((0, 0), (1, 1), (1, 1), (0, 0), (0, 0)))
    cols = [xp[:, kd:kd + D, kh:kh + H].reshape(N, D * H, W * Cin)
            for kd in range(3) for kh in range(3)]
    x_cols = jnp.concatenate(cols, axis=-1).reshape(M, K).astype(jnp.bfloat16)

    # Row tile: one big tile at this size (fewest grid steps); a divisor of M otherwise,
    # so there is never an XLA-side pad of activations or a tail slice.
    if M <= 2048:
        tm = M
    else:
        tm = D * H
    assert M % tm == 0 and tm % 8 == 0
    T = M // tm
    # TODO(synk): for volumes whose (M, 128) f32 conv intermediate exceeds VMEM, spill the
    # y scratch to HBM with manual DMA (or go to a 3-phase mean/var pipeline).

    kernel = partial(_fused_output_kernel, m_count=float(N * D * H * W), eps=eps)
    out = pl.pallas_call(
        kernel,
        grid_spec=pltpu.PrefetchScalarGridSpec(
            num_scalar_prefetch=0,
            grid=(2, T),                                   # (phase, row tile), both serial
            in_specs=[
                # x tiles are only needed in phase 0: (1-p)*t pins phase 1 to block 0
                # (re-fetched at most once, never used).
                pl.BlockSpec((tm, K), lambda p, t: ((1 - p) * t, 0)),
                pl.BlockSpec((K, L), lambda p, t: (0, 0)),   # banded conv weight (bf16)
                pl.BlockSpec((1, L), lambda p, t: (0, 0)),   # conv1 bias, lane-tiled
                pl.BlockSpec((L, L), lambda p, t: (0, 0)),   # stat fold matrix
                pl.BlockSpec((1, L), lambda p, t: (0, 0)),   # BN gamma, lane-tiled
                pl.BlockSpec((1, L), lambda p, t: (0, 0)),   # BN beta, lane-tiled
                pl.BlockSpec((L, L), lambda p, t: (0, 0)),   # block-diag 1x1 weight (bf16)
                pl.BlockSpec((1, L), lambda p, t: (0, 0)),   # conv2 bias, lane-tiled
                pl.BlockSpec((L, L), lambda p, t: (0, 0)),   # block-diag softmax ones
            ],
            # p*t keeps the output block index monotone: nothing is flushed during phase 0
            # and every block is written exactly once in phase 1.
            out_specs=pl.BlockSpec((tm, L), lambda p, t: (p * t, 0)),
            scratch_shapes=[
                pltpu.VMEM((M, L), jnp.float32),             # VMEM-resident conv output
                pltpu.VMEM((1, L), jnp.float32),             # BN sum
                pltpu.VMEM((1, L), jnp.float32),             # BN sum of squares
            ],
        ),
        out_shape=jax.ShapeDtypeStruct((M, L), jnp.float32),
        compiler_params=pltpu.CompilerParams(
            dimension_semantics=("arbitrary", "arbitrary")),
    )(x_cols, params["wbig"], params["b1"], params["fold"], params["gamma"],
      params["beta"], params["w2"], params["b2"], params["ones"])

    out = out.reshape(N, D, H, W, Cout)                     # packed rows are NDHWC-contiguous
    return jnp.transpose(out, (0, 4, 1, 2, 3))              # NDHWC -> NCDHW


if __name__ == "__main__":
    key = jax.random.PRNGKey(0)
    k1, k2, k3, k4, k5, k6, k7 = jax.random.split(key, 7)
    N, Cin, Cout, D, H, W = 2, 4, 8, 8, 8, 16               # W * Cout = 128 (lane-dense)

    x = jax.random.normal(k1, (N, Cin, D, H, W), jnp.float32)
    w1 = 0.1 * jax.random.normal(k2, (Cout, Cin, 3, 3, 3), jnp.float32)   # conv1 weight OIDHW
    b1 = 0.1 * jax.random.normal(k3, (Cout,), jnp.float32)                # conv1 bias
    gamma = 1.0 + 0.1 * jax.random.normal(k4, (Cout,), jnp.float32)       # BN weight
    beta = 0.1 * jax.random.normal(k5, (Cout,), jnp.float32)              # BN bias
    w2 = 0.2 * jax.random.normal(k6, (Cout, Cout, 1, 1, 1), jnp.float32)  # conv2 weight
    b2 = 0.1 * jax.random.normal(k7, (Cout,), jnp.float32)                # conv2 bias

    params = pack_output_params(w1, b1, gamma, beta, w2, b2, W=W)         # once per weight set
    out = jax.block_until_ready(output_forward(x, params))

    # pure-JAX reference: conv3d SAME + training-mode BN + ReLU + 1x1 conv + channel softmax
    x_ndhwc = jnp.transpose(x, (0, 2, 3, 4, 1))
    w1_dhwio = jnp.transpose(w1, (2, 3, 4, 1, 0))
    y_ref = jax.lax.conv_general_dilated(
        x_ndhwc, w1_dhwio, (1, 1, 1), [(1, 1)] * 3,
        dimension_numbers=("NDHWC", "DHWIO", "NDHWC"),
        precision=jax.lax.Precision.HIGHEST) + b1
    mean_r = y_ref.mean(axis=(0, 1, 2, 3))
    var_r = y_ref.var(axis=(0, 1, 2, 3))
    h_ref = jnp.maximum((y_ref - mean_r) * gamma * jax.lax.rsqrt(var_r + 1e-5) + beta, 0.0)
    z_ref = jnp.einsum("ndhwc,co->ndhwo", h_ref, w2[:, :, 0, 0, 0].T,
                       precision=jax.lax.Precision.HIGHEST) + b2
    ref = jax.nn.softmax(z_ref, axis=-1)
    ref = jnp.transpose(ref, (0, 4, 1, 2, 3))

    assert out.shape == ref.shape == (N, Cout, D, H, W)
    err = float(jnp.max(jnp.abs(out - ref)))
    # bf16 MXU operands (f32 accumulation) -> slightly looser tolerance than pure f32.
    assert jnp.allclose(out, ref, atol=2e-2, rtol=2e-2), f"max abs err {err}"
    print("KERNEL_OK")
</pallas_src>

<mosaic_0001>
module attributes {stable_mosaic.version = 11 : i64} {
  func.func @_fused_output_kernel(%arg0: i32, %arg1: i32, %arg2: memref<128x576xbf16, #tpu.memory_space<vmem>>, %arg3: memref<576x128xbf16, #tpu.memory_space<vmem>>, %arg4: memref<1x128xf32, #tpu.memory_space<vmem>>, %arg5: memref<128x128xf32, #tpu.memory_space<vmem>>, %arg6: memref<1x128xf32, #tpu.memory_space<vmem>>, %arg7: memref<1x128xf32, #tpu.memory_space<vmem>>, %arg8: memref<128x128xbf16, #tpu.memory_space<vmem>>, %arg9: memref<1x128xf32, #tpu.memory_space<vmem>>, %arg10: memref<128x128xf32, #tpu.memory_space<vmem>>, %arg11: memref<128x128xf32, #tpu.memory_space<vmem>>, %arg12: memref<128x128xf32, #tpu.memory_space<vmem>>, %arg13: memref<1x128xf32, #tpu.memory_space<vmem>>, %arg14: memref<1x128xf32, #tpu.memory_space<vmem>>) attributes {dimension_semantics = [#tpu.dimension_semantics<arbitrary>, #tpu.dimension_semantics<arbitrary>], iteration_bounds = array<i64: 2, 1>, scalar_prefetch = 0 : i64, scratch_operands = 3 : i64, tpu.core_type = #tpu.core_type<tc>, window_params = [{transform_indices = @transform_0, window_bounds = array<i64: 128, 576>}, {pipeline_mode = #tpu.pipeline_mode<synchronous>, transform_indices = @transform_1, window_bounds = array<i64: 576, 128>}, {pipeline_mode = #tpu.pipeline_mode<synchronous>, transform_indices = @transform_2, window_bounds = array<i64: 1, 128>}, {pipeline_mode = #tpu.pipeline_mode<synchronous>, transform_indices = @transform_3, window_bounds = array<i64: 128, 128>}, {pipeline_mode = #tpu.pipeline_mode<synchronous>, transform_indices = @transform_4, window_bounds = array<i64: 1, 128>}, {pipeline_mode = #tpu.pipeline_mode<synchronous>, transform_indices = @transform_5, window_bounds = array<i64: 1, 128>}, {pipeline_mode = #tpu.pipeline_mode<synchronous>, transform_indices = @transform_6, window_bounds = array<i64: 128, 128>}, {pipeline_mode = #tpu.pipeline_mode<synchronous>, transform_indices = @transform_7, window_bounds = array<i64: 1, 128>}, {pipeline_mode = #tpu.pipeline_mode<synchronous>, transform_indices = @transform_8, window_bounds = array<i64: 128, 128>}, {transform_indices = @transform_9, window_bounds = array<i64: 128, 128>}]} {
    %c128_i32 = arith.constant 128 : i32
    %0 = arith.muli %arg1, %c128_i32 : i32
    %1 = tpu.assume_multiple %0, 8 : i32
    %c0_i32 = arith.constant 0 : i32
    %2 = arith.cmpi eq, %arg0, %c0_i32 : i32
    %3 = arith.extui %2 : i1 to i32
    %c0_i32_0 = arith.constant 0 : i32
    %4 = arith.cmpi ne, %3, %c0_i32_0 : i32
    scf.if %4 {
      %c0_i32_2 = arith.constant 0 : i32
      %8 = arith.cmpi eq, %arg1, %c0_i32_2 : i32
      %9 = arith.extui %8 : i1 to i32
      %c0_i32_3 = arith.constant 0 : i32
      %10 = arith.cmpi ne, %9, %c0_i32_3 : i32
      scf.if %10 {
        %cst_20 = arith.constant 0.000000e+00 : f32
        %30 = vector.broadcast %cst_20 : f32 to vector<1x128xf32>
        %c0_21 = arith.constant 0 : index
        %c0_22 = arith.constant 0 : index
        %31 = vector.load %arg13[%c0_21, %c0_22] : memref<1x128xf32, #tpu.memory_space<vmem>>, vector<1x128xf32>
        tpu.vector_store %arg13[%c0_21, %c0_22], %30 {strides = array<i32>} : memref<1x128xf32, #tpu.memory_space<vmem>>, vector<1x128xf32>,
        %cst_23 = arith.constant 0.000000e+00 : f32
        %32 = vector.broadcast %cst_23 : f32 to vector<1x128xf32>
        %c0_24 = arith.constant 0 : index
        %c0_25 = arith.constant 0 : index
        %33 = vector.load %arg14[%c0_24, %c0_25] : memref<1x128xf32, #tpu.memory_space<vmem>>, vector<1x128xf32>
        tpu.vector_store %arg14[%c0_24, %c0_25], %32 {strides = array<i32>} : memref<1x128xf32, #tpu.memory_space<vmem>>, vector<1x128xf32>,
      } else {
      }
      %c0 = arith.constant 0 : index
      %c0_4 = arith.constant 0 : index
      %11 = vector.load %arg2[%c0, %c0_4] : memref<128x576xbf16, #tpu.memory_space<vmem>>, vector<128x576xbf16>
      %c0_5 = arith.constant 0 : index
      %c0_6 = arith.constant 0 : index
      %12 = vector.load %arg3[%c0_5, %c0_6] : memref<576x128xbf16, #tpu.memory_space<vmem>>, vector<576x128xbf16>
      %cst = arith.constant dense<0.000000e+00> : vector<128x128xf32>
      %13 = tpu.matmul %11, %12, %cst {dimension_numbers = #tpu.dot_dimension_numbers<[1], [0], [0], [1], [0, 0, 1, 1], [], []>} : vector<128x576xbf16>, vector<576x128xbf16>, vector<128x128xf32> -> vector<128x128xf32>
      %c0_7 = arith.constant 0 : index
      %c0_8 = arith.constant 0 : index
      %14 = vector.load %arg4[%c0_7, %c0_8] : memref<1x128xf32, #tpu.memory_space<vmem>>, vector<1x128xf32>
      %15 = vector.broadcast %14 : vector<1x128xf32> to vector<128x128xf32>
      %16 = arith.addf %13, %15 : vector<128x128xf32>
      %17 = arith.index_cast %1 : i32 to index
      %c0_9 = arith.constant 0 : index
      %18 = vector.load %arg12[%17, %c0_9] : memref<128x128xf32, #tpu.memory_space<vmem>>, vector<128x128xf32>
      tpu.vector_store %arg12[%17, %c0_9], %16 {strides = array<i32>} : memref<128x128xf32, #tpu.memory_space<vmem>>, vector<128x128xf32>,
      %c0_10 = arith.constant 0 : index
      %c0_11 = arith.constant 0 : index
      %19 = vector.load %arg13[%c0_10, %c0_11] : memref<1x128xf32, #tpu.memory_space<vmem>>, vector<1x128xf32>
      %cst_12 = arith.constant dense<0.000000e+00> : vector<128xf32>
      %20 = vector.multi_reduction <add>, %16, %cst_12 [0] : vector<128x128xf32> to vector<128xf32>
      %21 = vector.shape_cast %20 : vector<128xf32> to vector<1x128xf32>
      %22 = arith.addf %19, %21 : vector<1x128xf32>
      %c0_13 = arith.constant 0 : index
      %c0_14 = arith.constant 0 : index
      %23 = vector.load %arg13[%c0_13, %c0_14] : memref<1x128xf32, #tpu.memory_space<vmem>>, vector<1x128xf32>
      tpu.vector_store %arg13[%c0_13, %c0_14], %22 {strides = array<i32>} : memref<1x128xf32, #tpu.memory_space<vmem>>, vector<1x128xf32>,
      %c0_15 = arith.constant 0 : index
      %c0_16 = arith.constant 0 : index
      %24 = vector.load %arg14[%c0_15, %c0_16] : memref<1x128xf32, #tpu.memory_space<vmem>>, vector<1x128xf32>
      %25 = arith.mulf %16, %16 : vector<128x128xf32>
      %cst_17 = arith.constant dense<0.000000e+00> : vector<128xf32>
      %26 = vector.multi_reduction <add>, %25, %cst_17 [0] : vector<128x128xf32> to vector<128xf32>
      %27 = vector.shape_cast %26 : vector<128xf32> to vector<1x128xf32>
      %28 = arith.addf %24, %27 : vector<1x128xf32>
      %c0_18 = arith.constant 0 : index
      %c0_19 = arith.constant 0 : index
      %29 = vector.load %arg14[%c0_18, %c0_19] : memref<1x128xf32, #tpu.memory_space<vmem>>, vector<1x128xf32>
      tpu.vector_store %arg14[%c0_18, %c0_19], %28 {strides = array<i32>} : memref<1x128xf32, #tpu.memory_space<vmem>>, vector<1x128xf32>,
    } else {
    }
    %c1_i32 = arith.constant 1 : i32
    %5 = arith.cmpi eq, %arg0, %c1_i32 : i32
    %6 = arith.extui %5 : i1 to i32
    %c0_i32_1 = arith.constant 0 : i32
    %7 = arith.cmpi ne, %6, %c0_i32_1 : i32
    scf.if %7 {
      %c0 = arith.constant 0 : index
      %c0_2 = arith.constant 0 : index
      %8 = vector.load %arg13[%c0, %c0_2] : memref<1x128xf32, #tpu.memory_space<vmem>>, vector<1x128xf32>
      %c0_3 = arith.constant 0 : index
      %c0_4 = arith.constant 0 : index
      %9 = vector.load %arg5[%c0_3, %c0_4] : memref<128x128xf32, #tpu.memory_space<vmem>>, vector<128x128xf32>
      %cst = arith.constant dense<0.000000e+00> : vector<1x128xf32>
      %10 = tpu.matmul %8, %9, %cst {dimension_numbers = #tpu.dot_dimension_numbers<[1], [0], [0], [1], [0, 0, 1, 1], [], []>} : vector<1x128xf32>, vector<128x128xf32>, vector<1x128xf32> -> vector<1x128xf32>
      %c0_5 = arith.constant 0 : index
      %c0_6 = arith.constant 0 : index
      %11 = vector.load %arg14[%c0_5, %c0_6] : memref<1x128xf32, #tpu.memory_space<vmem>>, vector<1x128xf32>
      %c0_7 = arith.constant 0 : index
      %c0_8 = arith.constant 0 : index
      %12 = vector.load %arg5[%c0_7, %c0_8] : memref<128x128xf32, #tpu.memory_space<vmem>>, vector<128x128xf32>
      %cst_9 = arith.constant dense<0.000000e+00> : vector<1x128xf32>
      %13 = tpu.matmul %11, %12, %cst_9 {dimension_numbers = #tpu.dot_dimension_numbers<[1], [0], [0], [1], [0, 0, 1, 1], [], []>} : vector<1x128xf32>, vector<128x128xf32>, vector<1x128xf32> -> vector<1x128xf32>
      %cst_10 = arith.constant 4.8828125E-4 : f32
      %14 = vector.broadcast %cst_10 : f32 to vector<1x128xf32>
      %15 = arith.mulf %10, %14 : vector<1x128xf32>
      %cst_11 = arith.constant 4.8828125E-4 : f32
      %16 = vector.broadcast %cst_11 : f32 to vector<1x128xf32>
      %17 = arith.mulf %13, %16 : vector<1x128xf32>
      %18 = arith.mulf %15, %15 : vector<1x128xf32>
      %19 = arith.subf %17, %18 : vector<1x128xf32>
      %c0_12 = arith.constant 0 : index
      %c0_13 = arith.constant 0 : index
      %20 = vector.load %arg6[%c0_12, %c0_13] : memref<1x128xf32, #tpu.memory_space<vmem>>, vector<1x128xf32>
      %cst_14 = arith.constant 9.99999974E-6 : f32
      %21 = vector.broadcast %cst_14 : f32 to vector<1x128xf32>
      %22 = arith.addf %19, %21 : vector<1x128xf32>
      %23 = math.rsqrt %22 : vector<1x128xf32>
      %24 = arith.mulf %20, %23 : vector<1x128xf32>
      %c0_15 = arith.constant 0 : index
      %c0_16 = arith.constant 0 : index
      %25 = vector.load %arg7[%c0_15, %c0_16] : memref<1x128xf32, #tpu.memory_space<vmem>>, vector<1x128xf32>
      %26 = arith.mulf %15, %24 : vector<1x128xf32>
      %27 = arith.subf %25, %26 : vector<1x128xf32>
      %28 = arith.index_cast %1 : i32 to index
      %c0_17 = arith.constant 0 : index
      %29 = vector.load %arg12[%28, %c0_17] : memref<128x128xf32, #tpu.memory_space<vmem>>, vector<128x128xf32>
      %30 = vector.broadcast %24 : vector<1x128xf32> to vector<128x128xf32>
      %31 = arith.mulf %29, %30 : vector<128x128xf32>
      %32 = vector.broadcast %27 : vector<1x128xf32> to vector<128x128xf32>
      %33 = arith.addf %31, %32 : vector<128x128xf32>
      %cst_18 = arith.constant 0.000000e+00 : f32
      %34 = vector.broadcast %cst_18 : f32 to vector<128x128xf32>
      %35 = arith.maximumf %33, %34 : vector<128x128xf32>
      %36 = arith.truncf %35 : vector<128x128xf32> to vector<128x128xbf16>
      %c0_19 = arith.constant 0 : index
      %c0_20 = arith.constant 0 : index
      %37 = vector.load %arg8[%c0_19, %c0_20] : memref<128x128xbf16, #tpu.memory_space<vmem>>, vector<128x128xbf16>
      %cst_21 = arith.constant dense<0.000000e+00> : vector<128x128xf32>
      %38 = tpu.matmul %36, %37, %cst_21 {dimension_numbers = #tpu.dot_dimension_numbers<[1], [0], [0], [1], [0, 0, 1, 1], [], []>} : vector<128x128xbf16>, vector<128x128xbf16>, vector<128x128xf32> -> vector<128x128xf32>
      %c0_22 = arith.constant 0 : index
      %c0_23 = arith.constant 0 : index
      %39 = vector.load %arg9[%c0_22, %c0_23] : memref<1x128xf32, #tpu.memory_space<vmem>>, vector<1x128xf32>
      %40 = vector.broadcast %39 : vector<1x128xf32> to vector<128x128xf32>
      %41 = arith.addf %38, %40 : vector<128x128xf32>
      %cst_24 = arith.constant dense<0xFF800000> : vector<128xf32>
      %42 = vector.multi_reduction <maximumf>, %41, %cst_24 [1] : vector<128x128xf32> to vector<128xf32>
      %43 = vector.shape_cast %42 : vector<128xf32> to vector<128x1xf32>
      %44 = vector.broadcast %43 : vector<128x1xf32> to vector<128x128xf32>
      %45 = arith.subf %41, %44 : vector<128x128xf32>
      %46 = math.exp %45 : vector<128x128xf32>
      %c0_25 = arith.constant 0 : index
      %c0_26 = arith.constant 0 : index
      %47 = vector.load %arg10[%c0_25, %c0_26] : memref<128x128xf32, #tpu.memory_space<vmem>>, vector<128x128xf32>
      %cst_27 = arith.constant dense<0.000000e+00> : vector<128x128xf32>
      %48 = tpu.matmul %46, %47, %cst_27 {dimension_numbers = #tpu.dot_dimension_numbers<[1], [0], [0], [1], [0, 0, 1, 1], [], []>} : vector<128x128xf32>, vector<128x128xf32>, vector<128x128xf32> -> vector<128x128xf32>
      %49 = tpu.reciprocal %48 {approx = true} : vector<128x128xf32> -> vector<128x128xf32>
      %50 = arith.mulf %46, %49 : vector<128x128xf32>
      %c0_28 = arith.constant 0 : index
      %c0_29 = arith.constant 0 : index
      %51 = vector.load %arg11[%c0_28, %c0_29] : memref<128x128xf32, #tpu.memory_space<vmem>>, vector<128x128xf32>
      tpu.vector_store %arg11[%c0_28, %c0_29], %50 {strides = array<i32>} : memref<128x128xf32, #tpu.memory_space<vmem>>, vector<128x128xf32>,
    } else {
    }
    return
  }
  func.func @transform_0(%arg0: i32, %arg1: i32) -> (i32, i32) {
    %c1_i32 = arith.constant 1 : i32
    %0 = arith.subi %c1_i32, %arg0 : i32
    %1 = arith.muli %0, %arg1 : i32
    %c0_i32 = arith.constant 0 : i32
    %c0_i32_0 = arith.constant 0 : i32
    return %1, %c0_i32 : i32, i32
  }
  func.func @transform_1(%arg0: i32, %arg1: i32) -> (i32, i32) {
    %c0_i32 = arith.constant 0 : i32
    %c0_i32_0 = arith.constant 0 : i32
    %c0_i32_1 = arith.constant 0 : i32
    return %c0_i32, %c0_i32_0 : i32, i32
  }
  func.func @transform_2(%arg0: i32, %arg1: i32) -> (i32, i32) {
    %c0_i32 = arith.constant 0 : i32
    %c0_i32_0 = arith.constant 0 : i32
    %c0_i32_1 = arith.constant 0 : i32
    return %c0_i32, %c0_i32_0 : i32, i32
  }
  func.func @transform_3(%arg0: i32, %arg1: i32) -> (i32, i32) {
    %c0_i32 = arith.constant 0 : i32
    %c0_i32_0 = arith.constant 0 : i32
    %c0_i32_1 = arith.constant 0 : i32
    return %c0_i32, %c0_i32_0 : i32, i32
  }
  func.func @transform_4(%arg0: i32, %arg1: i32) -> (i32, i32) {
    %c0_i32 = arith.constant 0 : i32
    %c0_i32_0 = arith.constant 0 : i32
    %c0_i32_1 = arith.constant 0 : i32
    return %c0_i32, %c0_i32_0 : i32, i32
  }
  func.func @transform_5(%arg0: i32, %arg1: i32) -> (i32, i32) {
    %c0_i32 = arith.constant 0 : i32
    %c0_i32_0 = arith.constant 0 : i32
    %c0_i32_1 = arith.constant 0 : i32
    return %c0_i32, %c0_i32_0 : i32, i32
  }
  func.func @transform_6(%arg0: i32, %arg1: i32) -> (i32, i32) {
    %c0_i32 = arith.constant 0 : i32
    %c0_i32_0 = arith.constant 0 : i32
    %c0_i32_1 = arith.constant 0 : i32
    return %c0_i32, %c0_i32_0 : i32, i32
  }
  func.func @transform_7(%arg0: i32, %arg1: i32) -> (i32, i32) {
    %c0_i32 = arith.constant 0 : i32
    %c0_i32_0 = arith.constant 0 : i32
    %c0_i32_1 = arith.constant 0 : i32
    return %c0_i32, %c0_i32_0 : i32, i32
  }
  func.func @transform_8(%arg0: i32, %arg1: i32) -> (i32, i32) {
    %c0_i32 = arith.constant 0 : i32
    %c0_i32_0 = arith.constant 0 : i32
    %c0_i32_1 = arith.constant 0 : i32
    return %c0_i32, %c0_i32_0 : i32, i32
  }
  func.func @transform_9(%arg0: i32, %arg1: i32) -> (i32, i32) {
    %0 = arith.muli %arg0, %arg1 : i32
    %c0_i32 = arith.constant 0 : i32
    %c0_i32_0 = arith.constant 0 : i32
    return %0, %c0_i32 : i32, i32
  }
}

</mosaic_0001>

<llo_original>
// kernel: output_forward.1
$region0: #{output_forward.1}
  #allocation0 [shape = 'u32[]', space=smem, size = 0x4, offset = 0x4, fixed_abs, tag = 'smem constant byte address 0x4 - core index']
  #allocation1 [shape = 'u32[144,128]{1,0:T(1,128)}', space=vmem, size = 0x12000, scoped, tag = 'internal scratch']
  #allocation2 [shape = 'f32[128,128]{1,0:T(8,128)}', space=vmem, size = 0x10000, scoped, tag = 'scratch operand']
  #allocation3 [shape = 'f32[1,128]{1,0:T(1,128)}', space=vmem, size = 0x200, scoped, tag = 'scratch operand']
  #allocation4 [shape = 'f32[1,128]{1,0:T(1,128)}', space=vmem, size = 0x200, scoped, tag = 'scratch operand']
  %s0 = inlined_call_operand.vmem [shape: bf16[128,576], index: 0, kind: input, shape index: {}]
  %s1 = inlined_call_operand.vmem [shape: bf16[576,128], index: 1, kind: input, shape index: {}]
  %s2 = inlined_call_operand.vmem [shape: f32[1,128], index: 2, kind: input, shape index: {}]
  %s3 = inlined_call_operand.vmem [shape: f32[128,128], index: 3, kind: input, shape index: {}]
  %s4 = inlined_call_operand.vmem [shape: f32[1,128], index: 4, kind: input, shape index: {}]
  %s5 = inlined_call_operand.vmem [shape: f32[1,128], index: 5, kind: input, shape index: {}]
  %s6 = inlined_call_operand.vmem [shape: bf16[128,128], index: 6, kind: input, shape index: {}]
  %s7 = inlined_call_operand.vmem [shape: f32[1,128], index: 7, kind: input, shape index: {}]
  %s8 = inlined_call_operand.vmem [shape: f32[128,128], index: 8, kind: input, shape index: {}]
  %s9 = inlined_call_operand.vmem [shape: f32[128,128], index: 9, kind: output, shape index: {}]
  %s10 = sld [smem:[#allocation0]]
  $region81: #{output_forward.1} parent=0
    _
  %s12 = ssub.s32 1, %s10
  %s13 = scalar_select 0, %s12, %s10
  loop: start=0, step=1, limit=4
  $region2: #{output_forward.1} parent=0 // loop_pre_header
    _
  $region3: #{output_forward.1} parent=0 // loop_header
    %s15 = sphi 0, %s19
    %p16 = scmp.ge.s32.totalorder %s15, 4
    %s22 = sphi 0, %s34
    %s23 = sphi 0, %s30
    %s24 = sphi 0, %s22
    %s25 = sphi 0, %s23
    %s26 = sphi 0, %s24
    %s27 = sphi 0, %s25
    %s41 = sphi 0, %s43
    %s44 = sphi 0, %s41
    %s45 = sphi 0, %s44
    %s61 = sphi 0, %s45
    %s65 = sphi 0, %s65
    %s67 = sphi 0, %s65
    %s68 = sphi 0, %s67
    %s82 = sphi 0, %s68
    %s86 = sphi 0, %s86
    %s88 = sphi 0, %s86
    %s89 = sphi 0, %s88
    %s103 = sphi 0, %s89
    %s107 = sphi 0, %s107
    %s109 = sphi 0, %s107
    %s110 = sphi 0, %s109
    %s124 = sphi 0, %s110
    %s128 = sphi 0, %s128
    %s130 = sphi 0, %s128
    %s131 = sphi 0, %s130
    %s145 = sphi 0, %s131
    %s149 = sphi 0, %s149
    %s151 = sphi 0, %s149
    %s152 = sphi 0, %s151
    %s166 = sphi 0, %s152
    %s170 = sphi 0, %s170
    %s172 = sphi 0, %s170
    %s173 = sphi 0, %s172
    %s187 = sphi 0, %s173
    %s191 = sphi 0, %s191
    %s193 = sphi 0, %s191
    %s194 = sphi 0, %s193
    %s208 = sphi 0, %s194
    %s212 = sphi 0, %s212
    %s214 = sphi 0, %s212
    %s215 = sphi 0, %s214
    %s229 = sphi 0, %s215
    %s237 = sphi 0, %s239
    %s240 = sphi 0, %s237
    %s241 = sphi 0, %s240
    %s257 = sphi 0, %s241
  $region4: #{output_forward.1} parent=0 // loop_header_branch
    %18 = sbr.rel (%p16) target = $region8
  $region5: #{output_forward.1} parent=0 // loop_body
    %s20 = ssub.s32 %s15, 1
    %s21 = ssub.s32 %s15, 2
    %s28 = sadd.s32 1, %s23
    %p29 = scmp.ge.s32.totalorder %s28, 1
    %s30 = scalar_select %p29, 0, %s28
    %s31 = sadd.s32 1, %s22
    %s32 = scalar_select %p29, %s31, %s22
    %p33 = scmp.ge.s32.totalorder %s32, 2
    %s34 = scalar_select %p33, 0, %s32
    %s35 = ssub.s32 1, %s22
    %s36 = smul.u32 %s35, %s23
    %s37 = ssub.s32 1, %s34
    %s38 = smul.u32 %s37, %s30
    %s39 = ssub.s32 %s36, %s38
    %p40 = scmp.eq.s32.totalorder %s39, 0
    %s42 = sadd.s32 %s41, 1
    %s43 = scalar_select %p40, %s41, %s42
    %p46 = pneg %p40
    %p47 = scmp.eq.s32.totalorder %s15, 1
    %p48 = por %p46, %p47
    %p49 = scmp.ne.s32.totalorder %s41, %s44
    %p50 = scmp.eq.s32.totalorder %s15, 0
    %p51 = por %p49, %p50
    %p52 = scmp.ne.s32.totalorder %s41, %s44
    %p53 = scmp.eq.s32.totalorder %s20, 1
    %p54 = por %p52, %p53
    %p55 = scmp.ne.s32.totalorder %s44, %s45
    %p56 = scmp.eq.s32.totalorder %s20, 0
    %p57 = por %p55, %p56
    %p58 = scmp.ne.s32.totalorder %s44, %s45
    %p59 = scmp.eq.s32.totalorder %s21, 1
    %p60 = por %p58, %p59
    %p62 = scmp.ne.s32.totalorder %s45, %s61
    %p63 = scmp.eq.s32.totalorder %s21, 0
    %p64 = por %p62, %p63
    %s66 = sadd.s32 %s65, 1
    %p69 = scmp.eq.s32.totalorder %s15, 1
    %p70 = scmp.ne.s32.totalorder %s65, %s67
    %p71 = scmp.eq.s32.totalorder %s15, 0
    %p72 = por %p70, %p71
    %p73 = scmp.ne.s32.totalorder %s65, %s67
    %p74 = scmp.eq.s32.totalorder %s20, 1
    %p75 = por %p73, %p74
    %p76 = scmp.ne.s32.totalorder %s67, %s68
    %p77 = scmp.eq.s32.totalorder %s20, 0
    %p78 = por %p76, %p77
    %p79 = scmp.ne.s32.totalorder %s67, %s68
    %p80 = scmp.eq.s32.totalorder %s21, 1
    %p81 = por %p79, %p80
    %p83 = scmp.ne.s32.totalorder %s68, %s82
    %p84 = scmp.eq.s32.totalorder %s21, 0
    %p85 = por %p83, %p84
    %s87 = sadd.s32 %s86, 1
    %p90 = scmp.eq.s32.totalorder %s15, 1
    %p91 = scmp.ne.s32.totalorder %s86, %s88
    %p92 = scmp.eq.s32.totalorder %s15, 0
    %p93 = por %p91, %p92
    %p94 = scmp.ne.s32.totalorder %s86, %s88
    %p95 = scmp.eq.s32.totalorder %s20, 1
    %p96 = por %p94, %p95
    %p97 = scmp.ne.s32.totalorder %s88, %s89
    %p98 = scmp.eq.s32.totalorder %s20, 0
    %p99 = por %p97, %p98
    %p100 = scmp.ne.s32.totalorder %s88, %s89
    %p101 = scmp.eq.s32.totalorder %s21, 1
    %p102 = por %p100, %p101
    %p104 = scmp.ne.s32.totalorder %s89, %s103
    %p105 = scmp.eq.s32.totalorder %s21, 0
    %p106 = por %p104, %p105
    %s108 = sadd.s32 %s107, 1
    %p111 = scmp.eq.s32.totalorder %s15, 1
    %p112 = scmp.ne.s32.totalorder %s107, %s109
    %p113 = scmp.eq.s32.totalorder %s15, 0
    %p114 = por %p112, %p113
    %p115 = scmp.ne.s32.totalorder %s107, %s109
    %p116 = scmp.eq.s32.totalorder %s20, 1
    %p117 = por %p115, %p116
    %p118 = scmp.ne.s32.totalorder %s109, %s110
    %p119 = scmp.eq.s32.totalorder %s20, 0
    %p120 = por %p118, %p119
    %p121 = scmp.ne.s32.totalorder %s109, %s110
    %p122 = scmp.eq.s32.totalorder %s21, 1
    %p123 = por %p121, %p122
    %p125 = scmp.ne.s32.totalorder %s110, %s124
    %p126 = scmp.eq.s32.totalorder %s21, 0
    %p127 = por %p125, %p126
    %s129 = sadd.s32 %s128, 1
    %p132 = scmp.eq.s32.totalorder %s15, 1
    %p133 = scmp.ne.s32.totalorder %s128, %s130
    %p134 = scmp.eq.s32.totalorder %s15, 0
    %p135 = por %p133, %p134
    %p136 = scmp.ne.s32.totalorder %s128, %s130
    %p137 = scmp.eq.s32.totalorder %s20, 1
    %p138 = por %p136, %p137
    %p139 = scmp.ne.s32.totalorder %s130, %s131
    %p140 = scmp.eq.s32.totalorder %s20, 0
    %p141 = por %p139, %p140
    %p142 = scmp.ne.s32.totalorder %s130, %s131
    %p143 = scmp.eq.s32.totalorder %s21, 1
    %p144 = por %p142, %p143
    %p146 = scmp.ne.s32.totalorder %s131, %s145
    %p147 = scmp.eq.s32.totalorder %s21, 0
    %p148 = por %p146, %p147
    %s150 = sadd.s32 %s149, 1
    %p153 = scmp.eq.s32.totalorder %s15, 1
    %p154 = scmp.ne.s32.totalorder %s149, %s151
    %p155 = scmp.eq.s32.totalorder %s15, 0
    %p156 = por %p154, %p155
    %p157 = scmp.ne.s32.totalorder %s149, %s151
    %p158 = scmp.eq.s32.totalorder %s20, 1
    %p159 = por %p157, %p158
    %p160 = scmp.ne.s32.totalorder %s151, %s152
    %p161 = scmp.eq.s32.totalorder %s20, 0
    %p162 = por %p160, %p161
    %p163 = scmp.ne.s32.totalorder %s151, %s152
    %p164 = scmp.eq.s32.totalorder %s21, 1
    %p165 = por %p163, %p164
    %p167 = scmp.ne.s32.totalorder %s152, %s166
    %p168 = scmp.eq.s32.totalorder %s21, 0
    %p169 = por %p167, %p168
    %s171 = sadd.s32 %s170, 1
    %p174 = scmp.eq.s32.totalorder %s15, 1
    %p175 = scmp.ne.s32.totalorder %s170, %s172
    %p176 = scmp.eq.s32.totalorder %s15, 0
    %p177 = por %p175, %p176
    %p178 = scmp.ne.s32.totalorder %s170, %s172
    %p179 = scmp.eq.s32.totalorder %s20, 1
    %p180 = por %p178, %p179
    %p181 = scmp.ne.s32.totalorder %s172, %s173
    %p182 = scmp.eq.s32.totalorder %s20, 0
    %p183 = por %p181, %p182
    %p184 = scmp.ne.s32.totalorder %s172, %s173
    %p185 = scmp.eq.s32.totalorder %s21, 1
    %p186 = por %p184, %p185
    %p188 = scmp.ne.s32.totalorder %s173, %s187
    %p189 = scmp.eq.s32.totalorder %s21, 0
    %p190 = por %p188, %p189
    %s192 = sadd.s32 %s191, 1
    %p195 = scmp.eq.s32.totalorder %s15, 1
    %p196 = scmp.ne.s32.totalorder %s191, %s193
    %p197 = scmp.eq.s32.totalorder %s15, 0
    %p198 = por %p196, %p197
    %p199 = scmp.ne.s32.totalorder %s191, %s193
    %p200 = scmp.eq.s32.totalorder %s20, 1
    %p201 = por %p199, %p200
    %p202 = scmp.ne.s32.totalorder %s193, %s194
    %p203 = scmp.eq.s32.totalorder %s20, 0
    %p204 = por %p202, %p203
    %p205 = scmp.ne.s32.totalorder %s193, %s194
    %p206 = scmp.eq.s32.totalorder %s21, 1
    %p207 = por %p205, %p206
    %p209 = scmp.ne.s32.totalorder %s194, %s208
    %p210 = scmp.eq.s32.totalorder %s21, 0
    %p211 = por %p209, %p210
    %s213 = sadd.s32 %s212, 1
    %p216 = scmp.eq.s32.totalorder %s15, 1
    %p217 = scmp.ne.s32.totalorder %s212, %s214
    %p218 = scmp.eq.s32.totalorder %s15, 0
    %p219 = por %p217, %p218
    %p220 = scmp.ne.s32.totalorder %s212, %s214
    %p221 = scmp.eq.s32.totalorder %s20, 1
    %p222 = por %p220, %p221
    %p223 = scmp.ne.s32.totalorder %s214, %s215
    %p224 = scmp.eq.s32.totalorder %s20, 0
    %p225 = por %p223, %p224
    %p226 = scmp.ne.s32.totalorder %s214, %s215
    %p227 = scmp.eq.s32.totalorder %s21, 1
    %p228 = por %p226, %p227
    %p230 = scmp.ne.s32.totalorder %s215, %s229
    %p231 = scmp.eq.s32.totalorder %s21, 0
    %p232 = por %p230, %p231
    %s233 = smul.u32 %s22, %s23
    %s234 = smul.u32 %s34, %s30
    %s235 = ssub.s32 %s233, %s234
    %p236 = scmp.eq.s32.totalorder %s235, 0
    %s238 = sadd.s32 %s237, 1
    %s239 = scalar_select %p236, %s237, %s238
    %p242 = pneg %p236
    %p243 = scmp.eq.s32.totalorder %s15, 1
    %p244 = por %p242, %p243
    %p245 = scmp.ne.s32.totalorder %s237, %s240
    %p246 = scmp.eq.s32.totalorder %s15, 0
    %p247 = por %p245, %p246
    %p248 = scmp.ne.s32.totalorder %s237, %s240
    %p249 = scmp.eq.s32.totalorder %s20, 1
    %p250 = por %p248, %p249
    %p251 = scmp.ne.s32.totalorder %s240, %s241
    %p252 = scmp.eq.s32.totalorder %s20, 0
    %p253 = por %p251, %p252
    %p254 = scmp.ne.s32.totalorder %s240, %s241
    %p255 = scmp.eq.s32.totalorder %s21, 1
    %p256 = por %p254, %p255
    %p258 = scmp.ne.s32.totalorder %s241, %s257
    %p259 = scmp.eq.s32.totalorder %s21, 0
    %p260 = por %p258, %p259
    %p261 = scmp.le.s32.totalorder 1, %s15
    %p262 = scmp.lt.s32.totalorder %s15, 3
    %p263 = pnand %p261, %p262
    %p264 = pneg %p263
    // Predicated region
    $region9: #{output_forward.1} parent=5 // pred_check
      _
    $region10: #{output_forward.1} parent=5 // pred_check_branch
      %266 = sbr.rel (%p263) target = $region12
    $region11: #{output_forward.1} parent=5 // pred_region
      %s267 = ssub.s32 %s15, 1
      // Predicated region
      $region13: #{output_forward.1} parent=11 // pred_check
        %p268 = pneg %p78
      $region14: #{output_forward.1} parent=11 // pred_check_branch
        %270 = sbr.rel (%p268) target = $region16
      $region15: #{output_forward.1} parent=11 // pred_region
        _
      $region16: #{output_forward.1} parent=11 // pred_fallthru
        _
      // Predicated region
      $region17: #{output_forward.1} parent=11 // pred_check
        %p271 = pneg %p99
      $region18: #{output_forward.1} parent=11 // pred_check_branch
        %273 = sbr.rel (%p271) target = $region20
      $region19: #{output_forward.1} parent=11 // pred_region
        _
      $region20: #{output_forward.1} parent=11 // pred_fallthru
        _
      // Predicated region
      $region21: #{output_forward.1} parent=11 // pred_check
        %p274 = pneg %p120
      $region22: #{output_forward.1} parent=11 // pred_check_branch
        %276 = sbr.rel (%p274) target = $region24
      $region23: #{output_forward.1} parent=11 // pred_region
        _
      $region24: #{output_forward.1} parent=11 // pred_fallthru
        _
      // Predicated region
      $region25: #{output_forward.1} parent=11 // pred_check
        %p277 = pneg %p141
      $region26: #{output_forward.1} parent=11 // pred_check_branch
        %279 = sbr.rel (%p277) target = $region28
      $region27: #{output_forward.1} parent=11 // pred_region
        _
      $region28: #{output_forward.1} parent=11 // pred_fallthru
        _
      // Predicated region
      $region29: #{output_forward.1} parent=11 // pred_check
        %p280 = pneg %p162
      $region30: #{output_forward.1} parent=11 // pred_check_branch
        %282 = sbr.rel (%p280) target = $region32
      $region31: #{output_forward.1} parent=11 // pred_region
        _
      $region32: #{output_forward.1} parent=11 // pred_fallthru
        _
      // Predicated region
      $region33: #{output_forward.1} parent=11 // pred_check
        %p283 = pneg %p183
      $region34: #{output_forward.1} parent=11 // pred_check_branch
        %285 = sbr.rel (%p283) target = $region36
      $region35: #{output_forward.1} parent=11 // pred_region
        _
      $region36: #{output_forward.1} parent=11 // pred_fallthru
        _
      // Predicated region
      $region37: #{output_forward.1} parent=11 // pred_check
        %p286 = pneg %p204
      $region38: #{output_forward.1} parent=11 // pred_check_branch
        %288 = sbr.rel (%p286) target = $region40
      $region39: #{output_forward.1} parent=11 // pred_region
        _
      $region40: #{output_forward.1} parent=11 // pred_fallthru
        _
      // Predicated region
      $region41: #{output_forward.1} parent=11 // pred_check
        %p289 = pneg %p225
      $region42: #{output_forward.1} parent=11 // pred_check_branch
        %291 = sbr.rel (%p289) target = $region44
      $region43: #{output_forward.1} parent=11 // pred_region
        _
      $region44: #{output_forward.1} parent=11 // pred_fallthru
        _
    $region12: #{output_forward.1} parent=5 // pred_fallthru
      _
    %p292 = scmp.lt.s32.totalorder %s15, 2
    // Predicated region
    $region45: #{output_forward.1} parent=5 // pred_check
      %p293 = pneg %p292
    $region46: #{output_forward.1} parent=5 // pred_check_branch
      %295 = sbr.rel (%p293) target = $region48
    $region47: #{output_forward.1} parent=5 // pred_region
      // Predicated region
      $region49: #{output_forward.1} parent=47 // pred_check
        %p296 = pneg %p51
      $region50: #{output_forward.1} parent=47 // pred_check_branch
        %298 = sbr.rel (%p296) target = $region52
      $region51: #{output_forward.1} parent=47 // pred_region
        %s299 = ssub.s32 1, %s22
        %s300 = smul.u32 %s299, %s23
        %s301 = smul.u32 16, %s300
        %p302 = scmp.lt.s32.totalorder %s301, 15
        %s303 = scalar_select %p302, %s301, 15
        %s304 = smul.addr %s303, 5
        %s305 = smul.addr %s304, 4
        %s306 = scalar_lea.vmem %s0, %s305
        %s307 = ssub.s32 1, %s22
        %s308 = smul.u32 %s307, %s23
        %s309 = smul.u32 16, %s308
      $region52: #{output_forward.1} parent=47 // pred_fallthru
        _
    $region48: #{output_forward.1} parent=5 // pred_fallthru
      _
    %p310 = scmp.le.s32.totalorder 1, %s15
    %p311 = scmp.lt.s32.totalorder %s15, 3
    %p312 = pnand %p310, %p311
    %p313 = pneg %p312
    // Predicated region
    $region53: #{output_forward.1} parent=5 // pred_check
      _
    $region54: #{output_forward.1} parent=5 // pred_check_branch
      %315 = sbr.rel (%p312) target = $region56
    $region55: #{output_forward.1} parent=5 // pred_region
      %s316 = ssub.s32 %s15, 1
      %s317 = ssub.s32 1, %s24
      %s318 = smul.u32 %s317, %s25
      %s319 = smul.u32 16, %s318
      %p320 = scmp.lt.s32.totalorder %s319, 15
      %s321 = scalar_select %p320, %s319, 15
      %s322 = smul.addr %s321, 5
      %s323 = smul.addr %s322, 4
      %s324 = scalar_lea.vmem %s0, %s323
      %p325 = pneg %p57
      %p326 = pneg %p54
      %p327 = pneg %p78
      %p328 = pneg %p75
      %p329 = pneg %p99
      %p330 = pneg %p96
      %p331 = pneg %p120
      %p332 = pneg %p117
      %p333 = pneg %p141
      %p334 = pneg %p138
      %p335 = pneg %p162
      %p336 = pneg %p159
      %p337 = pneg %p183
      %p338 = pneg %p180
      %p339 = pneg %p204
      %p340 = pneg %p201
      %p341 = pneg %p225
      %p342 = pneg %p222
      %p343 = pneg %p253
      %p344 = pneg %p250
      %s345 = smul.u32 %s24, %s25
      %s346 = smul.u32 16, %s345
      %p347 = scmp.lt.s32.totalorder %s346, 15
      %s348 = scalar_select %p347, %s346, 15
      %s349 = smul.addr %s348, 8
      %s350 = scalar_lea.vmem %s9, %s349
      %s351 = ssub.s32 1, %s24
      %s352 = smul.u32 %s351, %s25
      %s353 = smul.u32 16, %s352
      %p354 = scmp.lt.s32.totalorder %s353, 15
      %s355 = scalar_select %p354, %s353, 15
      %s356 = smul.addr %s355, 5
      %s357 = smul.addr %s356, 4
      %s358 = scalar_lea.vmem %s0, %s357
      %s359 = ssub.s32 1, %s24
      %s360 = smul.u32 %s359, %s25
      %s361 = smul.u32 16, %s360
      %s362 = smul.u32 %s24, %s25
      %s363 = smul.u32 16, %s362
      %p364 = scmp.lt.s32.totalorder %s363, 15
      %s365 = scalar_select %p364, %s363, 15
      %s366 = smul.addr %s365, 8
      %s367 = scalar_lea.vmem %s9, %s366
      %s368 = smul.u32 %s24, %s25
      %s369 = smul.u32 16, %s368
      %s371 = smul.u32 %s25, 128
      %p372 = scmp.eq.s32.totalorder %s24, 0
      // Predicated region
      $region57: #{output_forward.1} parent=55 // pred_check
        %p373 = pneg %p372
      $region58: #{output_forward.1} parent=55 // pred_check_branch
        %375 = sbr.rel (%p373) target = $region60
      $region59: #{output_forward.1} parent=55 // pred_region
        %p376 = scmp.eq.s32.totalorder %s25, 0
        // Predicated region
        $region61: #{output_forward.1} parent=59 // pred_check
          %p377 = pneg %p376
        $region62: #{output_forward.1} parent=59 // pred_check_branch
          %379 = sbr.rel (%p377) target = $region64
        $region63: #{output_forward.1} parent=59 // pred_region
          %380 = vst [vmem:[#allocation3] sm:$0x1] 0.0
          %381 = vst [vmem:[#allocation4] sm:$0x1] 0.0
        $region64: #{output_forward.1} parent=59 // pred_fallthru
          _
        %v382 = vld [vmem:[%s358] sm:$0xff]
        %v383 = vld [vmem:[%s358 + $0x8] sm:$0xff]
        %v384 = vld [vmem:[%s358 + $0x10] sm:$0xf]
        %v385 = vld [vmem:[%s358 + $0x14] sm:$0xff]
        %v386 = vld [vmem:[%s358 + $0x1c] sm:$0xff]
        %v387 = vld [vmem:[%s358 + $0x24] sm:$0xf]
        %v388 = vld [vmem:[%s358 + $0x28] sm:$0xff]
        %v389 = vld [vmem:[%s358 + $0x30] sm:$0xff]
        %v390 = vld [vmem:[%s358 + $0x38] sm:$0xf]
        %v391 = vld [vmem:[%s358 + $0x3c] sm:$0xff]
        %v392 = vld [vmem:[%s358 + $0x44] sm:$0xff]
        %v393 = vld [vmem:[%s358 + $0x4c] sm:$0xf]
        %v394 = vld [vmem:[%s358 + $0x50] sm:$0xff]
        %v395 = vld [vmem:[%s358 + $0x58] sm:$0xff]
        %v396 = vld [vmem:[%s358 + $0x60] sm:$0xf]
        %v397 = vld [vmem:[%s358 + $0x64] sm:$0xff]
        %v398 = vld [vmem:[%s358 + $0x6c] sm:$0xff]
        %v399 = vld [vmem:[%s358 + $0x74] sm:$0xf]
        %v400 = vld [vmem:[%s358 + $0x78] sm:$0xff]
        %v401 = vld [vmem:[%s358 + $0x80] sm:$0xff]
        %v402 = vld [vmem:[%s358 + $0x88] sm:$0xf]
        %v403 = vld [vmem:[%s358 + $0x8c] sm:$0xff]
        %v404 = vld [vmem:[%s358 + $0x94] sm:$0xff]
        %v405 = vld [vmem:[%s358 + $0x9c] sm:$0xf]
        %v406 = vld [vmem:[%s358 + $0xa0] sm:$0xff]
        %v407 = vld [vmem:[%s358 + $0xa8] sm:$0xff]
        %v408 = vld [vmem:[%s358 + $0xb0] sm:$0xf]
        %v409 = vld [vmem:[%s358 + $0xb4] sm:$0xff]
        %v410 = vld [vmem:[%s358 + $0xbc] sm:$0xff]
        %v411 = vld [vmem:[%s358 + $0xc4] sm:$0xf]
        %v412 = vld [vmem:[%s358 + $0xc8] sm:$0xff]
        %v413 = vld [vmem:[%s358 + $0xd0] sm:$0xff]
        %v414 = vld [vmem:[%s358 + $0xd8] sm:$0xf]
        %v415 = vld [vmem:[%s358 + $0xdc] sm:$0xff]
        %v416 = vld [vmem:[%s358 + $0xe4] sm:$0xff]
        %v417 = vld [vmem:[%s358 + $0xec] sm:$0xf]
        %v418 = vld [vmem:[%s358 + $0xf0] sm:$0xff]
        %v419 = vld [vmem:[%s358 + $0xf8] sm:$0xff]
        %v420 = vld [vmem:[%s358 + $0x100] sm:$0xf]
        %v421 = vld [vmem:[%s358 + $0x104] sm:$0xff]
        %v422 = vld [vmem:[%s358 + $0x10c] sm:$0xff]
        %v423 = vld [vmem:[%s358 + $0x114] sm:$0xf]
        %v424 = vld [vmem:[%s358 + $0x118] sm:$0xff]
        %v425 = vld [vmem:[%s358 + $0x120] sm:$0xff]
        %v426 = vld [vmem:[%s358 + $0x128] sm:$0xf]
        %v427 = vld [vmem:[%s358 + $0x12c] sm:$0xff]
        %v428 = vld [vmem:[%s358 + $0x134] sm:$0xff]
        %v429 = vld [vmem:[%s358 + $0x13c] sm:$0xf]
        %v430 = vld [vmem:[%s1] sm:$0xf]
        %v431 = vld [vmem:[%s1 + $0x4] sm:$0xf]
        %v432 = vld [vmem:[%s1 + $0x8] sm:$0xf]
        %v433 = vld [vmem:[%s1 + $0xc] sm:$0xf]
        %v434 = vld [vmem:[%s1 + $0x10] sm:$0xf]
        %v435 = vld [vmem:[%s1 + $0x14] sm:$0xf]
        %v436 = vld [vmem:[%s1 + $0x18] sm:$0xf]
        %v437 = vld [vmem:[%s1 + $0x1c] sm:$0xf]
        %v438 = vld [vmem:[%s1 + $0x20] sm:$0xf]
        %v439 = vld [vmem:[%s1 + $0x24] sm:$0xf]
        %v440 = vld [vmem:[%s1 + $0x28] sm:$0xf]
        %v441 = vld [vmem:[%s1 + $0x2c] sm:$0xf]
        %v442 = vld [vmem:[%s1 + $0x30] sm:$0xf]
        %v443 = vld [vmem:[%s1 + $0x34] sm:$0xf]
        %v444 = vld [vmem:[%s1 + $0x38] sm:$0xf]
        %v445 = vld [vmem:[%s1 + $0x3c] sm:$0xf]
        %v446 = vld [vmem:[%s1 + $0x40] sm:$0xf]
        %v447 = vld [vmem:[%s1 + $0x44] sm:$0xf]
        %v448 = vld [vmem:[%s1 + $0x48] sm:$0xf]
        %v449 = vld [vmem:[%s1 + $0x4c] sm:$0xf]
        %v450 = vld [vmem:[%s1 + $0x50] sm:$0xf]
        %v451 = vld [vmem:[%s1 + $0x54] sm:$0xf]
        %v452 = vld [vmem:[%s1 + $0x58] sm:$0xf]
        %v453 = vld [vmem:[%s1 + $0x5c] sm:$0xf]
        %v454 = vld [vmem:[%s1 + $0x60] sm:$0xf]
        %v455 = vld [vmem:[%s1 + $0x64] sm:$0xf]
        %v456 = vld [vmem:[%s1 + $0x68] sm:$0xf]
        %v457 = vld [vmem:[%s1 + $0x6c] sm:$0xf]
        %v458 = vld [vmem:[%s1 + $0x70] sm:$0xf]
        %v459 = vld [vmem:[%s1 + $0x74] sm:$0xf]
        %v460 = vld [vmem:[%s1 + $0x78] sm:$0xf]
        %v461 = vld [vmem:[%s1 + $0x7c] sm:$0xf]
        %v462 = vld [vmem:[%s1 + $0x80] sm:$0xf]
        %v463 = vld [vmem:[%s1 + $0x84] sm:$0xf]
        %v464 = vld [vmem:[%s1 + $0x88] sm:$0xf]
        %v465 = vld [vmem:[%s1 + $0x8c] sm:$0xf]
        %v466 = vld [vmem:[%s1 + $0x90] sm:$0xf]
        %v467 = vld [vmem:[%s1 + $0x94] sm:$0xf]
        %v468 = vld [vmem:[%s1 + $0x98] sm:$0xf]
        %v469 = vld [vmem:[%s1 + $0x9c] sm:$0xf]
        %v470 = vld [vmem:[%s1 + $0xa0] sm:$0xf]
        %v471 = vld [vmem:[%s1 + $0xa4] sm:$0xf]
        %v472 = vld [vmem:[%s1 + $0xa8] sm:$0xf]
        %v473 = vld [vmem:[%s1 + $0xac] sm:$0xf]
        %v474 = vld [vmem:[%s1 + $0xb0] sm:$0xf]
        %v475 = vld [vmem:[%s1 + $0xb4] sm:$0xf]
        %v476 = vld [vmem:[%s1 + $0xb8] sm:$0xf]
        %v477 = vld [vmem:[%s1 + $0xbc] sm:$0xf]
        %v478 = vld [vmem:[%s1 + $0xc0] sm:$0xf]
        %v479 = vld [vmem:[%s1 + $0xc4] sm:$0xf]
        %v480 = vld [vmem:[%s1 + $0xc8] sm:$0xf]
        %v481 = vld [vmem:[%s1 + $0xcc] sm:$0xf]
        %v482 = vld [vmem:[%s1 + $0xd0] sm:$0xf]
        %v483 = vld [vmem:[%s1 + $0xd4] sm:$0xf]
        %v484 = vld [vmem:[%s1 + $0xd8] sm:$0xf]
        %v485 = vld [vmem:[%s1 + $0xdc] sm:$0xf]
        %v486 = vld [vmem:[%s1 + $0xe0] sm:$0xf]
        %v487 = vld [vmem:[%s1 + $0xe4] sm:$0xf]
        %v488 = vld [vmem:[%s1 + $0xe8] sm:$0xf]
        %v489 = vld [vmem:[%s1 + $0xec] sm:$0xf]
        %v490 = vld [vmem:[%s1 + $0xf0] sm:$0xf]
        %v491 = vld [vmem:[%s1 + $0xf4] sm:$0xf]
        %v492 = vld [vmem:[%s1 + $0xf8] sm:$0xf]
        %v493 = vld [vmem:[%s1 + $0xfc] sm:$0xf]
        %v494 = vld [vmem:[%s1 + $0x100] sm:$0xf]
        %v495 = vld [vmem:[%s1 + $0x104] sm:$0xf]
        %v496 = vld [vmem:[%s1 + $0x108] sm:$0xf]
        %v497 = vld [vmem:[%s1 + $0x10c] sm:$0xf]
        %v498 = vld [vmem:[%s1 + $0x110] sm:$0xf]
        %v499 = vld [vmem:[%s1 + $0x114] sm:$0xf]
        %v500 = vld [vmem:[%s1 + $0x118] sm:$0xf]
        %v501 = vld [vmem:[%s1 + $0x11c] sm:$0xf]
        %v502 = vld [vmem:[%s2] sm:$0x1]
        %v504 = vlaneseq
        %v505 = vshrl.u32 %v504, 7
        %v506 = vsub.s32 0, %v505
        %v507 = vrot.slane %v502, %v506
        %v557 = vunpack.c.l.b16 %v382
        %v558 = vunpack.c.h.b16 %v382
        %v559 = vunpack.c.l.b16 %v383
        %v560 = vunpack.c.h.b16 %v383
        %v561 = vunpack.c.l.b16 %v384
        %v562 = vunpack.c.l.b16 %v385
        %v563 = vunpack.c.h.b16 %v385
        %v564 = vunpack.c.l.b16 %v386
        %v565 = vunpack.c.h.b16 %v386
        %v566 = vunpack.c.l.b16 %v387
        %v567 = vunpack.c.l.b16 %v388
        %v568 = vunpack.c.h.b16 %v388
        %v569 = vunpack.c.l.b16 %v389
        %v570 = vunpack.c.h.b16 %v389
        %v571 = vunpack.c.l.b16 %v390
        %v572 = vunpack.c.l.b16 %v391
        %v573 = vunpack.c.h.b16 %v391
        %v574 = vunpack.c.l.b16 %v392
        %v575 = vunpack.c.h.b16 %v392
        %v576 = vunpack.c.l.b16 %v393
        %v577 = vunpack.c.l.b16 %v394
        %v578 = vunpack.c.h.b16 %v394
        %v579 = vunpack.c.l.b16 %v395
        %v580 = vunpack.c.h.b16 %v395
        %v581 = vunpack.c.l.b16 %v396
        %v582 = vunpack.c.l.b16 %v397
        %v583 = vunpack.c.h.b16 %v397
        %v584 = vunpack.c.l.b16 %v398
        %v585 = vunpack.c.h.b16 %v398
        %v586 = vunpack.c.l.b16 %v399
        %v587 = vunpack.c.l.b16 %v400
        %v588 = vunpack.c.h.b16 %v400
        %v589 = vunpack.c.l.b16 %v401
        %v590 = vunpack.c.h.b16 %v401
        %v591 = vunpack.c.l.b16 %v402
        %v592 = vunpack.c.l.b16 %v403
        %v593 = vunpack.c.h.b16 %v403
        %v594 = vunpack.c.l.b16 %v404
        %v595 = vunpack.c.h.b16 %v404
        %v596 = vunpack.c.l.b16 %v405
        %v597 = vunpack.c.l.b16 %v406
        %v598 = vunpack.c.h.b16 %v406
        %v599 = vunpack.c.l.b16 %v407
        %v600 = vunpack.c.h.b16 %v407
        %v601 = vunpack.c.l.b16 %v408
        %v602 = vunpack.c.l.b16 %v409
        %v603 = vunpack.c.h.b16 %v409
        %v604 = vunpack.c.l.b16 %v410
        %v605 = vunpack.c.h.b16 %v410
        %v606 = vunpack.c.l.b16 %v411
        %v607 = vunpack.c.l.b16 %v412
        %v608 = vunpack.c.h.b16 %v412
        %v609 = vunpack.c.l.b16 %v413
        %v610 = vunpack.c.h.b16 %v413
        %v611 = vunpack.c.l.b16 %v414
        %v612 = vunpack.c.l.b16 %v415
        %v613 = vunpack.c.h.b16 %v415
        %v614 = vunpack.c.l.b16 %v416
        %v615 = vunpack.c.h.b16 %v416
        %v616 = vunpack.c.l.b16 %v417
        %v617 = vunpack.c.l.b16 %v418
        %v618 = vunpack.c.h.b16 %v418
        %v619 = vunpack.c.l.b16 %v419
        %v620 = vunpack.c.h.b16 %v419
        %v621 = vunpack.c.l.b16 %v420
        %v622 = vunpack.c.l.b16 %v421
        %v623 = vunpack.c.h.b16 %v421
        %v624 = vunpack.c.l.b16 %v422
        %v625 = vunpack.c.h.b16 %v422
        %v626 = vunpack.c.l.b16 %v423
        %v627 = vunpack.c.l.b16 %v424
        %v628 = vunpack.c.h.b16 %v424
        %v629 = vunpack.c.l.b16 %v425
        %v630 = vunpack.c.h.b16 %v425
        %v631 = vunpack.c.l.b16 %v426
        %v632 = vunpack.c.l.b16 %v427
        %v633 = vunpack.c.h.b16 %v427
        %v634 = vunpack.c.l.b16 %v428
        %v635 = vunpack.c.h.b16 %v428
        %v636 = vunpack.c.l.b16 %v429
        %v637 = vpack.c.b16 %v562, %v557
        %v638 = vpack.c.b16 %v563, %v558
        %v639 = vpack.c.b16 %v564, %v559
        %v640 = vpack.c.b16 %v565, %v560
        %v641 = vpack.c.b16 %v566, %v561
        %v642 = vpack.c.b16 %v572, %v567
        %v643 = vpack.c.b16 %v573, %v568
        %v644 = vpack.c.b16 %v574, %v569
        %v645 = vpack.c.b16 %v575, %v570
        %v646 = vpack.c.b16 %v576, %v571
        %v647 = vpack.c.b16 %v582, %v577
        %v648 = vpack.c.b16 %v583, %v578
        %v649 = vpack.c.b16 %v584, %v579
        %v650 = vpack.c.b16 %v585, %v580
        %v651 = vpack.c.b16 %v586, %v581
        %v652 = vpack.c.b16 %v592, %v587
        %v653 = vpack.c.b16 %v593, %v588
        %v654 = vpack.c.b16 %v594, %v589
        %v655 = vpack.c.b16 %v595, %v590
        %v656 = vpack.c.b16 %v596, %v591
        %v657 = vpack.c.b16 %v602, %v597
        %v658 = vpack.c.b16 %v603, %v598
        %v659 = vpack.c.b16 %v604, %v599
        %v660 = vpack.c.b16 %v605, %v600
        %v661 = vpack.c.b16 %v606, %v601
        %v662 = vpack.c.b16 %v612, %v607
        %v663 = vpack.c.b16 %v613, %v608
        %v664 = vpack.c.b16 %v614, %v609
        %v665 = vpack.c.b16 %v615, %v610
        %v666 = vpack.c.b16 %v616, %v611
        %v667 = vpack.c.b16 %v622, %v617
        %v668 = vpack.c.b16 %v623, %v618
        %v669 = vpack.c.b16 %v624, %v619
        %v670 = vpack.c.b16 %v625, %v620
        %v671 = vpack.c.b16 %v626, %v621
        %v672 = vpack.c.b16 %v632, %v627
        %v673 = vpack.c.b16 %v633, %v628
        %v674 = vpack.c.b16 %v634, %v629
        %v675 = vpack.c.b16 %v635, %v630
        %v676 = vpack.c.b16 %v636, %v631
        %v781 = vunpack.c.l.b16 %v430
        %v782 = vunpack.c.l.b16 %v431
        %v783 = vunpack.c.l.b16 %v432
        %v784 = vunpack.c.l.b16 %v433
        %v785 = vunpack.c.l.b16 %v434
        %v786 = vunpack.c.l.b16 %v435
        %v787 = vunpack.c.l.b16 %v436
        %v788 = vunpack.c.l.b16 %v437
        %v789 = vunpack.c.l.b16 %v438
        %v790 = vunpack.c.l.b16 %v439
        %v791 = vunpack.c.l.b16 %v440
        %v792 = vunpack.c.l.b16 %v441
        %v793 = vunpack.c.l.b16 %v442
        %v794 = vunpack.c.l.b16 %v443
        %v795 = vunpack.c.l.b16 %v444
        %v796 = vunpack.c.l.b16 %v445
        %v797 = vunpack.c.l.b16 %v446
        %v798 = vunpack.c.l.b16 %v447
        %v799 = vunpack.c.l.b16 %v448
        %v800 = vunpack.c.l.b16 %v449
        %v801 = vunpack.c.l.b16 %v450
        %v802 = vunpack.c.l.b16 %v451
        %v803 = vunpack.c.l.b16 %v452
        %v804 = vunpack.c.l.b16 %v453
        %v805 = vunpack.c.l.b16 %v454
        %v806 = vunpack.c.l.b16 %v455
        %v807 = vunpack.c.l.b16 %v456
        %v808 = vunpack.c.l.b16 %v457
        %v809 = vunpack.c.l.b16 %v458
        %v810 = vunpack.c.l.b16 %v459
        %v811 = vunpack.c.l.b16 %v460
        %v812 = vunpack.c.l.b16 %v461
        %v813 = vunpack.c.l.b16 %v462
        %v814 = vunpack.c.l.b16 %v463
        %v815 = vunpack.c.l.b16 %v464
        %v816 = vunpack.c.l.b16 %v465
        %v817 = vunpack.c.l.b16 %v466
        %v818 = vunpack.c.l.b16 %v467
        %v819 = vunpack.c.l.b16 %v468
        %v820 = vunpack.c.l.b16 %v469
        %v821 = vunpack.c.l.b16 %v470
        %v822 = vunpack.c.l.b16 %v471
        %v823 = vunpack.c.l.b16 %v472
        %v824 = vunpack.c.l.b16 %v473
        %v825 = vunpack.c.l.b16 %v474
        %v826 = vunpack.c.l.b16 %v475
        %v827 = vunpack.c.l.b16 %v476
        %v828 = vunpack.c.l.b16 %v477
        %v829 = vunpack.c.l.b16 %v478
        %v830 = vunpack.c.l.b16 %v479
        %v831 = vunpack.c.l.b16 %v480
        %v832 = vunpack.c.l.b16 %v481
        %v833 = vunpack.c.l.b16 %v482
        %v834 = vunpack.c.l.b16 %v483
        %v835 = vunpack.c.l.b16 %v484
        %v836 = vunpack.c.l.b16 %v485
        %v837 = vunpack.c.l.b16 %v486
        %v838 = vunpack.c.l.b16 %v487
        %v839 = vunpack.c.l.b16 %v488
        %v840 = vunpack.c.l.b16 %v489
        %v841 = vunpack.c.l.b16 %v490
        %v842 = vunpack.c.l.b16 %v491
        %v843 = vunpack.c.l.b16 %v492
        %v844 = vunpack.c.l.b16 %v493
        %v845 = vunpack.c.l.b16 %v494
        %v846 = vunpack.c.l.b16 %v495
        %v847 = vunpack.c.l.b16 %v496
        %v848 = vunpack.c.l.b16 %v497
        %v849 = vunpack.c.l.b16 %v498
        %v850 = vunpack.c.l.b16 %v499
        %v851 = vunpack.c.l.b16 %v500
        %v852 = vunpack.c.l.b16 %v501
        %v853 = vpack.c.b16 %v782, %v781
        %v854 = vpack.c.b16 %v784, %v783
        %v855 = vpack.c.b16 %v786, %v785
        %v856 = vpack.c.b16 %v788, %v787
        %v857 = vpack.c.b16 %v790, %v789
        %v858 = vpack.c.b16 %v792, %v791
        %v859 = vpack.c.b16 %v794, %v793
        %v860 = vpack.c.b16 %v796, %v795
        %v861 = vpack.c.b16 %v798, %v797
        %v862 = vpack.c.b16 %v800, %v799
        %v863 = vpack.c.b16 %v802, %v801
        %v864 = vpack.c.b16 %v804, %v803
        %v865 = vpack.c.b16 %v806, %v805
        %v866 = vpack.c.b16 %v808, %v807
        %v867 = vpack.c.b16 %v810, %v809
        %v868 = vpack.c.b16 %v812, %v811
        %v869 = vpack.c.b16 %v814, %v813
        %v870 = vpack.c.b16 %v816, %v815
        %v871 = vpack.c.b16 %v818, %v817
        %v872 = vpack.c.b16 %v820, %v819
        %v873 = vpack.c.b16 %v822, %v821
        %v874 = vpack.c.b16 %v824, %v823
        %v875 = vpack.c.b16 %v826, %v825
        %v876 = vpack.c.b16 %v828, %v827
        %v877 = vpack.c.b16 %v830, %v829
        %v878 = vpack.c.b16 %v832, %v831
        %v879 = vpack.c.b16 %v834, %v833
        %v880 = vpack.c.b16 %v836, %v835
        %v881 = vpack.c.b16 %v838, %v837
        %v882 = vpack.c.b16 %v840, %v839
        %v883 = vpack.c.b16 %v842, %v841
        %v884 = vpack.c.b16 %v844, %v843
        %v885 = vpack.c.b16 %v846, %v845
        %v886 = vpack.c.b16 %v848, %v847
        %v887 = vpack.c.b16 %v850, %v849
        %v888 = vpack.c.b16 %v852, %v851
        %vm925 = vcmask 523264
        %v927 = vsel %vm925, %v641, 0
        %v930 = vsel %vm925, %v646, 0
        %v933 = vsel %vm925, %v651, 0
        %v936 = vsel %vm925, %v656, 0
        %v939 = vsel %vm925, %v661, 0
        %v942 = vsel %vm925, %v666, 0
        %v945 = vsel %vm925, %v671, 0
        %v948 = vsel %vm925, %v676, 0
        %950 = vmatprep.subr.bf16.mxu0 0
        %951 = vmatpush1.bf16.msra.mxu0 %v860
        %952 = vmatprep.subr.bf16.mxu0 0
        %953 = vmatpush1.bf16.msra.mxu0 %v859
        %954 = vmatprep.subr.bf16.mxu0 0
        %955 = vmatpush1.bf16.msra.mxu0 %v858
        %956 = vmatprep.subr.bf16.mxu0 0
        %957 = vmatpush1.bf16.msra.mxu0 %v857
        %958 = vmatprep.subr.bf16.mxu0 0
        %959 = vmatpush1.bf16.msra.mxu0 %v856
        %960 = vmatprep.subr.bf16.mxu0 0
        %961 = vmatpush1.bf16.msra.mxu0 %v855
        %962 = vmatprep.subr.bf16.mxu0 0
        %963 = vmatpush1.bf16.msra.mxu0 %v854
        %964 = vmatprep.subr.bf16.mxu0 0
        %965 = vmatpush1.bf16.msra.mxu0 %v853
        %966 = vmatprep.subr.bf16.mxu0 0
        %967 = vmatpush2.bf16.msra.mxu0 %v868
        %968 = vmatprep.subr.bf16.mxu0 0
        %969 = vmatpush2.bf16.msra.mxu0 %v867
        %970 = vmatprep.subr.bf16.mxu0 0
        %971 = vmatpush2.bf16.msra.mxu0 %v866
        %972 = vmatprep.subr.bf16.mxu0 0
        %973 = vmatpush2.bf16.msra.mxu0 %v865
        %974 = vmatprep.subr.bf16.mxu0 0
        %975 = vmatpush2.bf16.msra.mxu0 %v864
        %976 = vmatprep.subr.bf16.mxu0 0
        %977 = vmatpush2.bf16.msra.mxu0 %v863
        %978 = vmatprep.subr.bf16.mxu0 0
        %979 = vmatpush2.bf16.msra.mxu0 %v862
        %980 = vmatprep.subr.bf16.mxu0 0
        %981 = vmatpush2.bf16.msra.mxu0 %v861
        %982 = vmatprep.mubr.bf16.mxu0 %v638
        %983 = vmatmul.mubr.bf16.gmra.mxu0 %v637
        %v984 = vpop.f32.mrf.mxu0
        %v985 = vadd.f32 %v507, %v984
        %v986 = vpop.f32.mrf.mxu0
        %v987 = vpop.f32.mrf.mxu0
        %v988 = vadd.f32 %v507, %v987
        %v989 = vpop.f32.mrf.mxu0
        %990 = vmatprep.mubr.bf16.mxu0 %v643
        %991 = vmatmul.mubr.bf16.gmra.mxu0 %v642
        %v992 = vpop.f32.mrf.mxu0
        %v993 = vadd.f32 %v507, %v992
        %v994 = vpop.f32.mrf.mxu0
        %v995 = vpop.f32.mrf.mxu0
        %v996 = vadd.f32 %v507, %v995
        %v997 = vpop.f32.mrf.mxu0
        %998 = vmatprep.mubr.bf16.mxu0 %v648
        %999 = vmatmul.mubr.bf16.gmra.mxu0 %v647
        %v1000 = vpop.f32.mrf.mxu0
        %v1001 = vadd.f32 %v507, %v1000
        %v1002 = vpop.f32.mrf.mxu0
        %v1003 = vpop.f32.mrf.mxu0
        %v1004 = vadd.f32 %v507, %v1003
        %v1005 = vpop.f32.mrf.mxu0
        %1006 = vmatprep.mubr.bf16.mxu0 %v653
        %1007 = vmatmul.mubr.bf16.gmra.mxu0 %v652
        %v1008 = vpop.f32.mrf.mxu0
        %v1009 = vadd.f32 %v507, %v1008
        %v1010 = vpop.f32.mrf.mxu0
        %v1011 = vpop.f32.mrf.mxu0
        %v1012 = vadd.f32 %v507, %v1011
        %v1013 = vpop.f32.mrf.mxu0
        %1014 = vmatprep.mubr.bf16.mxu0 %v658
        %1015 = vmatmul.mubr.bf16.gmra.mxu0 %v657
        %v1016 = vpop.f32.mrf.mxu0
        %v1017 = vadd.f32 %v507, %v1016
        %v1018 = vpop.f32.mrf.mxu0
        %v1019 = vpop.f32.mrf.mxu0
        %v1020 = vadd.f32 %v507, %v1019
        %v1021 = vpop.f32.mrf.mxu0
        %1022 = vmatprep.mubr.bf16.mxu0 %v663
        %1023 = vmatmul.mubr.bf16.gmra.mxu0 %v662
        %v1024 = vpop.f32.mrf.mxu0
        %v1025 = vadd.f32 %v507, %v1024
        %v1026 = vpop.f32.mrf.mxu0
        %v1027 = vpop.f32.mrf.mxu0
        %v1028 = vadd.f32 %v507, %v1027
        %v1029 = vpop.f32.mrf.mxu0
        %1030 = vmatprep.mubr.bf16.mxu0 %v668
        %1031 = vmatmul.mubr.bf16.gmra.mxu0 %v667
        %v1032 = vpop.f32.mrf.mxu0
        %v1033 = vadd.f32 %v507, %v1032
        %v1034 = vpop.f32.mrf.mxu0
        %v1035 = vpop.f32.mrf.mxu0
        %v1036 = vadd.f32 %v507, %v1035
        %v1037 = vpop.f32.mrf.mxu0
        %1038 = vmatprep.mubr.bf16.mxu0 %v673
        %1039 = vmatmul.mubr.bf16.gmra.mxu0 %v672
        %v1040 = vpop.f32.mrf.mxu0
        %v1041 = vadd.f32 %v507, %v1040
        %v1042 = vpop.f32.mrf.mxu0
        %v1043 = vpop.f32.mrf.mxu0
        %v1044 = vadd.f32 %v507, %v1043
        %v1045 = vpop.f32.mrf.mxu0
        %1046 = vdwg.mxu0
        %1047 = vmatprep.subr.bf16.mxu0 0
        %1048 = vmatpush1.bf16.msra.mxu0 %v876
        %1049 = vmatprep.subr.bf16.mxu0 0
        %1050 = vmatpush1.bf16.msra.mxu0 %v875
        %1051 = vmatprep.subr.bf16.mxu0 0
        %1052 = vmatpush1.bf16.msra.mxu0 %v874
        %1053 = vmatprep.subr.bf16.mxu0 0
        %1054 = vmatpush1.bf16.msra.mxu0 %v873
        %1055 = vmatprep.subr.bf16.mxu0 0
        %1056 = vmatpush1.bf16.msra.mxu0 %v872
        %1057 = vmatprep.subr.bf16.mxu0 0
        %1058 = vmatpush1.bf16.msra.mxu0 %v871
        %1059 = vmatprep.subr.bf16.mxu0 0
        %1060 = vmatpush1.bf16.msra.mxu0 %v870
        %1061 = vmatprep.subr.bf16.mxu0 0
        %1062 = vmatpush1.bf16.msra.mxu0 %v869
        %1063 = vmatprep.subr.bf16.mxu0 0
        %1064 = vmatpush2.bf16.msra.mxu0 %v884
        %1065 = vmatprep.subr.bf16.mxu0 0
        %1066 = vmatpush2.bf16.msra.mxu0 %v883
        %1067 = vmatprep.subr.bf16.mxu0 0
        %1068 = vmatpush2.bf16.msra.mxu0 %v882
        %1069 = vmatprep.subr.bf16.mxu0 0
        %1070 = vmatpush2.bf16.msra.mxu0 %v881
        %1071 = vmatprep.subr.bf16.mxu0 0
        %1072 = vmatpush2.bf16.msra.mxu0 %v880
        %1073 = vmatprep.subr.bf16.mxu0 0
        %1074 = vmatpush2.bf16.msra.mxu0 %v879
        %1075 = vmatprep.subr.bf16.mxu0 0
        %1076 = vmatpush2.bf16.msra.mxu0 %v878
        %1077 = vmatprep.subr.bf16.mxu0 0
        %1078 = vmatpush2.bf16.msra.mxu0 %v877
        %1079 = vmatprep.mubr.bf16.mxu0 %v640
        %1080 = vmatmul.mubr.bf16.gmra.mxu0 %v639
        %v1081 = vpop.f32.mrf.mxu0
        %v1082 = vadd.f32 %v985, %v1081
        %v1083 = vpop.f32.mrf.mxu0
        %v1084 = vpop.f32.mrf.mxu0
        %v1085 = vadd.f32 %v988, %v1084
        %v1086 = vpop.f32.mrf.mxu0
        %1087 = vmatprep.mubr.bf16.mxu0 %v645
        %1088 = vmatmul.mubr.bf16.gmra.mxu0 %v644
        %v1089 = vpop.f32.mrf.mxu0
        %v1090 = vadd.f32 %v993, %v1089
        %v1091 = vpop.f32.mrf.mxu0
        %v1092 = vpop.f32.mrf.mxu0
        %v1093 = vadd.f32 %v996, %v1092
        %v1094 = vpop.f32.mrf.mxu0
        %1095 = vmatprep.mubr.bf16.mxu0 %v650
        %1096 = vmatmul.mubr.bf16.gmra.mxu0 %v649
        %v1097 = vpop.f32.mrf.mxu0
        %v1098 = vadd.f32 %v1001, %v1097
        %v1099 = vpop.f32.mrf.mxu0
        %v1100 = vpop.f32.mrf.mxu0
        %v1101 = vadd.f32 %v1004, %v1100
        %v1102 = vpop.f32.mrf.mxu0
        %1103 = vmatprep.mubr.bf16.mxu0 %v655
        %1104 = vmatmul.mubr.bf16.gmra.mxu0 %v654
        %v1105 = vpop.f32.mrf.mxu0
        %v1106 = vadd.f32 %v1009, %v1105
        %v1107 = vpop.f32.mrf.mxu0
        %v1108 = vpop.f32.mrf.mxu0
        %v1109 = vadd.f32 %v1012, %v1108
        %v1110 = vpop.f32.mrf.mxu0
        %1111 = vmatprep.mubr.bf16.mxu0 %v660
        %1112 = vmatmul.mubr.bf16.gmra.mxu0 %v659
        %v1113 = vpop.f32.mrf.mxu0
        %v1114 = vadd.f32 %v1017, %v1113
        %v1115 = vpop.f32.mrf.mxu0
        %v1116 = vpop.f32.mrf.mxu0
        %v1117 = vadd.f32 %v1020, %v1116
        %v1118 = vpop.f32.mrf.mxu0
        %1119 = vmatprep.mubr.bf16.mxu0 %v665
        %1120 = vmatmul.mubr.bf16.gmra.mxu0 %v664
        %v1121 = vpop.f32.mrf.mxu0
        %v1122 = vadd.f32 %v1025, %v1121
        %v1123 = vpop.f32.mrf.mxu0
        %v1124 = vpop.f32.mrf.mxu0
        %v1125 = vadd.f32 %v1028, %v1124
        %v1126 = vpop.f32.mrf.mxu0
        %1127 = vmatprep.mubr.bf16.mxu0 %v670
        %1128 = vmatmul.mubr.bf16.gmra.mxu0 %v669
        %v1129 = vpop.f32.mrf.mxu0
        %v1130 = vadd.f32 %v1033, %v1129
        %v1131 = vpop.f32.mrf.mxu0
        %v1132 = vpop.f32.mrf.mxu0
        %v1133 = vadd.f32 %v1036, %v1132
        %v1134 = vpop.f32.mrf.mxu0
        %1135 = vmatprep.mubr.bf16.mxu0 %v675
        %1136 = vmatmul.mubr.bf16.gmra.mxu0 %v674
        %v1137 = vpop.f32.mrf.mxu0
        %v1138 = vadd.f32 %v1041, %v1137
        %v1139 = vpop.f32.mrf.mxu0
        %v1140 = vpop.f32.mrf.mxu0
        %v1141 = vadd.f32 %v1044, %v1140
        %v1142 = vpop.f32.mrf.mxu0
        %1143 = vdwg.mxu0
        %1144 = vmatprep.subr.bf16.mxu0 0
        %1145 = vmatpush1.bf16.msra.mxu0 0
        %1146 = vmatprep.subr.bf16.mxu0 0
        %1147 = vmatpush1.bf16.msra.mxu0 0
        %1148 = vmatprep.subr.bf16.mxu0 0
        %1149 = vmatpush1.bf16.msra.mxu0 0
        %1150 = vmatprep.subr.bf16.mxu0 0
        %1151 = vmatpush1.bf16.msra.mxu0 0
        %1152 = vmatprep.subr.bf16.mxu0 0
        %1153 = vmatpush1.bf16.msra.mxu0 %v888
        %1154 = vmatprep.subr.bf16.mxu0 0
        %1155 = vmatpush1.bf16.msra.mxu0 %v887
        %1156 = vmatprep.subr.bf16.mxu0 0
        %1157 = vmatpush1.bf16.msra.mxu0 %v886
        %1158 = vmatprep.subr.bf16.mxu0 0
        %1159 = vmatpush1.bf16.msra.mxu0 %v885
        %1160 = vmatprep.subr.bf16.mxu0 0
        %1161 = vmatpush2.bf16.msra.mxu0 0
        %1162 = vmatprep.subr.bf16.mxu0 0
        %1163 = vmatpush2.bf16.msra.mxu0 0
        %1164 = vmatprep.subr.bf16.mxu0 0
        %1165 = vmatpush2.bf16.msra.mxu0 0
        %1166 = vmatprep.subr.bf16.mxu0 0
        %1167 = vmatpush2.bf16.msra.mxu0 0
        %1168 = vmatprep.subr.bf16.mxu0 0
        %1169 = vmatpush2.bf16.msra.mxu0 0
        %1170 = vmatprep.subr.bf16.mxu0 0
        %1171 = vmatpush2.bf16.msra.mxu0 0
        %1172 = vmatprep.subr.bf16.mxu0 0
        %1173 = vmatpush2.bf16.msra.mxu0 0
        %1174 = vmatprep.subr.bf16.mxu0 0
        %1175 = vmatpush2.bf16.msra.mxu0 0
        %1176 = vmatprep.mubr.bf16.mxu0 0
        %1177 = vmatmul.mubr.bf16.gmra.mxu0 %v927
        %v1178 = vpop.f32.mrf.mxu0
        %v1179 = vadd.f32 %v1082, %v1178
        %v1180 = vpop.f32.mrf.mxu0
        %v1181 = vpop.f32.mrf.mxu0
        %v1182 = vadd.f32 %v1085, %v1181
        %v1183 = vpop.f32.mrf.mxu0
        %1184 = vmatprep.mubr.bf16.mxu0 0
        %1185 = vmatmul.mubr.bf16.gmra.mxu0 %v930
        %v1186 = vpop.f32.mrf.mxu0
        %v1187 = vadd.f32 %v1090, %v1186
        %v1188 = vpop.f32.mrf.mxu0
        %v1189 = vpop.f32.mrf.mxu0
        %v1190 = vadd.f32 %v1093, %v1189
        %v1191 = vpop.f32.mrf.mxu0
        %1192 = vmatprep.mubr.bf16.mxu0 0
        %1193 = vmatmul.mubr.bf16.gmra.mxu0 %v933
        %v1194 = vpop.f32.mrf.mxu0
        %v1195 = vadd.f32 %v1098, %v1194
        %v1196 = vpop.f32.mrf.mxu0
        %v1197 = vpop.f32.mrf.mxu0
        %v1198 = vadd.f32 %v1101, %v1197
        %v1199 = vpop.f32.mrf.mxu0
        %1200 = vmatprep.mubr.bf16.mxu0 0
        %1201 = vmatmul.mubr.bf16.gmra.mxu0 %v936
        %v1202 = vpop.f32.mrf.mxu0
        %v1203 = vadd.f32 %v1106, %v1202
        %v1204 = vpop.f32.mrf.mxu0
        %v1205 = vpop.f32.mrf.mxu0
        %v1206 = vadd.f32 %v1109, %v1205
        %v1207 = vpop.f32.mrf.mxu0
        %1208 = vmatprep.mubr.bf16.mxu0 0
        %1209 = vmatmul.mubr.bf16.gmra.mxu0 %v939
        %v1210 = vpop.f32.mrf.mxu0
        %v1211 = vadd.f32 %v1114, %v1210
        %v1212 = vpop.f32.mrf.mxu0
        %v1213 = vpop.f32.mrf.mxu0
        %v1214 = vadd.f32 %v1117, %v1213
        %v1215 = vpop.f32.mrf.mxu0
        %1216 = vmatprep.mubr.bf16.mxu0 0
        %1217 = vmatmul.mubr.bf16.gmra.mxu0 %v942
        %v1218 = vpop.f32.mrf.mxu0
        %v1219 = vadd.f32 %v1122, %v1218
        %v1220 = vpop.f32.mrf.mxu0
        %v1221 = vpop.f32.mrf.mxu0
        %v1222 = vadd.f32 %v1125, %v1221
        %v1223 = vpop.f32.mrf.mxu0
        %1224 = vmatprep.mubr.bf16.mxu0 0
        %1225 = vmatmul.mubr.bf16.gmra.mxu0 %v945
        %v1226 = vpop.f32.mrf.mxu0
        %v1227 = vadd.f32 %v1130, %v1226
        %v1228 = vpop.f32.mrf.mxu0
        %v1229 = vpop.f32.mrf.mxu0
        %v1230 = vadd.f32 %v1133, %v1229
        %v1231 = vpop.f32.mrf.mxu0
        %1232 = vmatprep.mubr.bf16.mxu0 0
        %1233 = vmatmul.mubr.bf16.gmra.mxu0 %v948
        %v1234 = vpop.f32.mrf.mxu0
        %v1235 = vadd.f32 %v1138, %v1234
        %v1236 = vpop.f32.mrf.mxu0
        %v1237 = vpop.f32.mrf.mxu0
        %v1238 = vadd.f32 %v1141, %v1237
        %v1239 = vpop.f32.mrf.mxu0
        %1240 = vdwg.mxu0
        %s1241 = scalar_lea.vmem [#allocation2], %s371
        %1242 = vst [vmem:[%s1241] sm:$0xff] %v1179
        %1243 = vst [vmem:[%s1241 + $0x8] sm:$0xff] %v1182
        %1244 = vst [vmem:[%s1241 + $0x10] sm:$0xff] %v1187
        %1245 = vst [vmem:[%s1241 + $0x18] sm:$0xff] %v1190
        %1246 = vst [vmem:[%s1241 + $0x20] sm:$0xff] %v1195
        %1247 = vst [vmem:[%s1241 + $0x28] sm:$0xff] %v1198
        %1248 = vst [vmem:[%s1241 + $0x30] sm:$0xff] %v1203
        %1249 = vst [vmem:[%s1241 + $0x38] sm:$0xff] %v1206
        %1250 = vst [vmem:[%s1241 + $0x40] sm:$0xff] %v1211
        %1251 = vst [vmem:[%s1241 + $0x48] sm:$0xff] %v1214
        %1252 = vst [vmem:[%s1241 + $0x50] sm:$0xff] %v1219
        %1253 = vst [vmem:[%s1241 + $0x58] sm:$0xff] %v1222
        %1254 = vst [vmem:[%s1241 + $0x60] sm:$0xff] %v1227
        %1255 = vst [vmem:[%s1241 + $0x68] sm:$0xff] %v1230
        %1256 = vst [vmem:[%s1241 + $0x70] sm:$0xff] %v1235
        %1257 = vst [vmem:[%s1241 + $0x78] sm:$0xff] %v1238
        %v1258 = vld [vmem:[#allocation3] sm:$0x1]
        %v1259 = vadd.f32 %v1179, %v1182
        %v1260 = vadd.f32 %v1259, %v1187
        %v1261 = vadd.f32 %v1260, %v1190
        %v1262 = vadd.f32 %v1261, %v1195
        %v1263 = vadd.f32 %v1262, %v1198
        %v1264 = vadd.f32 %v1263, %v1203
        %v1265 = vadd.f32 %v1264, %v1206
        %v1266 = vadd.f32 %v1265, %v1211
        %v1267 = vadd.f32 %v1266, %v1214
        %v1268 = vadd.f32 %v1267, %v1219
        %v1269 = vadd.f32 %v1268, %v1222
        %v1270 = vadd.f32 %v1269, %v1227
        %v1271 = vadd.f32 %v1270, %v1230
        %v1272 = vadd.f32 %v1271, %v1235
        %v1273 = vadd.f32 %v1272, %v1238
        %v1274 = vrot.slane %v1273, 4
        %v1275 = vadd.f32 %v1273, %v1274
        %v1276 = vrot.slane %v1275, 2
        %v1277 = vadd.f32 %v1275, %v1276
        %v1278 = vrot.slane %v1277, 1
        %v1279 = vadd.f32 %v1277, %v1278
        %v1280 = vadd.f32 %v1258, %v1279
        %1281 = vst [vmem:[#allocation3] sm:$0x1] %v1280
        %v1282 = vld [vmem:[#allocation4] sm:$0x1]
        %v1283 = vmul.f32 %v1179, %v1179
        %v1284 = vmul.f32 %v1182, %v1182
        %v1285 = vmul.f32 %v1187, %v1187
        %v1286 = vmul.f32 %v1190, %v1190
        %v1287 = vmul.f32 %v1195, %v1195
        %v1288 = vmul.f32 %v1198, %v1198
        %v1289 = vmul.f32 %v1203, %v1203
        %v1290 = vmul.f32 %v1206, %v1206
        %v1291 = vmul.f32 %v1211, %v1211
        %v1292 = vmul.f32 %v1214, %v1214
        %v1293 = vmul.f32 %v1219, %v1219
        %v1294 = vmul.f32 %v1222, %v1222
        %v1295 = vmul.f32 %v1227, %v1227
        %v1296 = vmul.f32 %v1230, %v1230
        %v1297 = vmul.f32 %v1235, %v1235
        %v1298 = vmul.f32 %v1238, %v1238
        %v1299 = vadd.f32 %v1283, %v1284
        %v1300 = vadd.f32 %v1299, %v1285
        %v1301 = vadd.f32 %v1300, %v1286
        %v1302 = vadd.f32 %v1301, %v1287
        %v1303 = vadd.f32 %v1302, %v1288
        %v1304 = vadd.f32 %v1303, %v1289
        %v1305 = vadd.f32 %v1304, %v1290
        %v1306 = vadd.f32 %v1305, %v1291
        %v1307 = vadd.f32 %v1306, %v1292
        %v1308 = vadd.f32 %v1307, %v1293
        %v1309 = vadd.f32 %v1308, %v1294
        %v1310 = vadd.f32 %v1309, %v1295
        %v1311 = vadd.f32 %v1310, %v1296
        %v1312 = vadd.f32 %v1311, %v1297
        %v1313 = vadd.f32 %v1312, %v1298
        %v1314 = vrot.slane %v1313, 4
        %v1315 = vadd.f32 %v1313, %v1314
        %v1316 = vrot.slane %v1315, 2
        %v1317 = vadd.f32 %v1315, %v1316
        %v1318 = vrot.slane %v1317, 1
        %v1319 = vadd.f32 %v1317, %v1318
        %v1320 = vadd.f32 %v1282, %v1319
        %1321 = vst [vmem:[#allocation4] sm:$0x1] %v1320
      $region60: #{output_forward.1} parent=55 // pred_fallthru
        _
      %p1322 = scmp.eq.s32.totalorder %s24, 1
      // Predicated region
      $region65: #{output_forward.1} parent=55 // pred_check
        %p1323 = pneg %p1322
      $region66: #{output_forward.1} parent=55 // pred_check_branch
        %1325 = sbr.rel (%p1323) target = $region68
      $region67: #{output_forward.1} parent=55 // pred_region
        %v1326 = vld [vmem:[#allocation3] sm:$0x1]
        %v1327 = vld [vmem:[%s3] sm:$0xff]
        %v1328 = vld [vmem:[%s3 + $0x8] sm:$0xff]
        %v1329 = vld [vmem:[%s3 + $0x10] sm:$0xff]
        %v1330 = vld [vmem:[%s3 + $0x18] sm:$0xff]
        %v1331 = vld [vmem:[%s3 + $0x20] sm:$0xff]
        %v1332 = vld [vmem:[%s3 + $0x28] sm:$0xff]
        %v1333 = vld [vmem:[%s3 + $0x30] sm:$0xff]
        %v1334 = vld [vmem:[%s3 + $0x38] sm:$0xff]
        %v1335 = vld [vmem:[%s3 + $0x40] sm:$0xff]
        %v1336 = vld [vmem:[%s3 + $0x48] sm:$0xff]
        %v1337 = vld [vmem:[%s3 + $0x50] sm:$0xff]
        %v1338 = vld [vmem:[%s3 + $0x58] sm:$0xff]
        %v1339 = vld [vmem:[%s3 + $0x60] sm:$0xff]
        %v1340 = vld [vmem:[%s3 + $0x68] sm:$0xff]
        %v1341 = vld [vmem:[%s3 + $0x70] sm:$0xff]
        %v1342 = vld [vmem:[%s3 + $0x78] sm:$0xff]
        %1343 = vmatprep.subr.mxu0 0.0
        %1344 = vmatpush1.msra.mxu0 %v1342
        %1345 = vmatprep.subr.mxu0 0.0
        %1346 = vmatpush1.msra.mxu0 %v1341
        %1347 = vmatprep.subr.mxu0 0.0
        %1348 = vmatpush1.msra.mxu0 %v1340
        %1349 = vmatprep.subr.mxu0 0.0
        %1350 = vmatpush1.msra.mxu0 %v1339
        %1351 = vmatprep.subr.mxu0 0.0
        %1352 = vmatpush1.msra.mxu0 %v1338
        %1353 = vmatprep.subr.mxu0 0.0
        %1354 = vmatpush1.msra.mxu0 %v1337
        %1355 = vmatprep.subr.mxu0 0.0
        %1356 = vmatpush1.msra.mxu0 %v1336
        %1357 = vmatprep.subr.mxu0 0.0
        %1358 = vmatpush1.msra.mxu0 %v1335
        %1359 = vmatprep.subr.mxu0 0.0
        %1360 = vmatpush1.msra.mxu0 %v1334
        %1361 = vmatprep.subr.mxu0 0.0
        %1362 = vmatpush1.msra.mxu0 %v1333
        %1363 = vmatprep.subr.mxu0 0.0
        %1364 = vmatpush1.msra.mxu0 %v1332
        %1365 = vmatprep.subr.mxu0 0.0
        %1366 = vmatpush1.msra.mxu0 %v1331
        %1367 = vmatprep.subr.mxu0 0.0
        %1368 = vmatpush1.msra.mxu0 %v1330
        %1369 = vmatprep.subr.mxu0 0.0
        %1370 = vmatpush1.msra.mxu0 %v1329
        %1371 = vmatprep.subr.mxu0 0.0
        %1372 = vmatpush1.msra.mxu0 %v1328
        %1373 = vmatprep.subr.mxu0 0.0
        %1374 = vmatpush1.msra.mxu0 %v1327
        %1375 = vmatprep.subr.mxu0 0.0
        %1376 = vmatpush2.msra.mxu0 0.0
        %1377 = vmatprep.subr.mxu0 0.0
        %1378 = vmatpush2.msra.mxu0 0.0
        %1379 = vmatprep.subr.mxu0 0.0
        %1380 = vmatpush2.msra.mxu0 0.0
        %1381 = vmatprep.subr.mxu0 0.0
        %1382 = vmatpush2.msra.mxu0 0.0
        %1383 = vmatprep.subr.mxu0 0.0
        %1384 = vmatpush2.msra.mxu0 0.0
        %1385 = vmatprep.subr.mxu0 0.0
        %1386 = vmatpush2.msra.mxu0 0.0
        %1387 = vmatprep.subr.mxu0 0.0
        %1388 = vmatpush2.msra.mxu0 0.0
        %1389 = vmatprep.subr.mxu0 0.0
        %1390 = vmatpush2.msra.mxu0 0.0
        %1391 = vmatprep.subr.mxu0 0.0
        %1392 = vmatpush2.msra.mxu0 0.0
        %1393 = vmatprep.subr.mxu0 0.0
        %1394 = vmatpush2.msra.mxu0 0.0
        %1395 = vmatprep.subr.mxu0 0.0
        %1396 = vmatpush2.msra.mxu0 0.0
        %1397 = vmatprep.subr.mxu0 0.0
        %1398 = vmatpush2.msra.mxu0 0.0
        %1399 = vmatprep.subr.mxu0 0.0
        %1400 = vmatpush2.msra.mxu0 0.0
        %1401 = vmatprep.subr.mxu0 0.0
        %1402 = vmatpush2.msra.mxu0 0.0
        %1403 = vmatprep.subr.mxu0 0.0
        %1404 = vmatpush2.msra.mxu0 0.0
        %1405 = vmatprep.subr.mxu0 0.0
        %1406 = vmatpush2.msra.mxu0 0.0
        %1407 = vmatprep.mubr.f32.mxu0 0.0
        %1408 = vmatmul.mubr.f32.gmra.mxu0 %v1326
        %v1409 = vpop.f32.mrf.mxu0
        %v1410 = vadd.f32 0.0, %v1409
        %v1411 = vpop.f32.mrf.mxu0
        %1412 = vdwg.mxu0
        %v1413 = vld [vmem:[#allocation4] sm:$0x1]
        %1414 = vmatprep.subr.mxu0 0.0
        %1415 = vmatpush1.msra.mxu0 %v1342
        %1416 = vmatprep.subr.mxu0 0.0
        %1417 = vmatpush1.msra.mxu0 %v1341
        %1418 = vmatprep.subr.mxu0 0.0
        %1419 = vmatpush1.msra.mxu0 %v1340
        %1420 = vmatprep.subr.mxu0 0.0
        %1421 = vmatpush1.msra.mxu0 %v1339
        %1422 = vmatprep.subr.mxu0 0.0
        %1423 = vmatpush1.msra.mxu0 %v1338
        %1424 = vmatprep.subr.mxu0 0.0
        %1425 = vmatpush1.msra.mxu0 %v1337
        %1426 = vmatprep.subr.mxu0 0.0
        %1427 = vmatpush1.msra.mxu0 %v1336
        %1428 = vmatprep.subr.mxu0 0.0
        %1429 = vmatpush1.msra.mxu0 %v1335
        %1430 = vmatprep.subr.mxu0 0.0
        %1431 = vmatpush1.msra.mxu0 %v1334
        %1432 = vmatprep.subr.mxu0 0.0
        %1433 = vmatpush1.msra.mxu0 %v1333
        %1434 = vmatprep.subr.mxu0 0.0
        %1435 = vmatpush1.msra.mxu0 %v1332
        %1436 = vmatprep.subr.mxu0 0.0
        %1437 = vmatpush1.msra.mxu0 %v1331
        %1438 = vmatprep.subr.mxu0 0.0
        %1439 = vmatpush1.msra.mxu0 %v1330
        %1440 = vmatprep.subr.mxu0 0.0
        %1441 = vmatpush1.msra.mxu0 %v1329
        %1442 = vmatprep.subr.mxu0 0.0
        %1443 = vmatpush1.msra.mxu0 %v1328
        %1444 = vmatprep.subr.mxu0 0.0
        %1445 = vmatpush1.msra.mxu0 %v1327
        %1446 = vmatprep.subr.mxu0 0.0
        %1447 = vmatpush2.msra.mxu0 0.0
        %1448 = vmatprep.subr.mxu0 0.0
        %1449 = vmatpush2.msra.mxu0 0.0
        %1450 = vmatprep.subr.mxu0 0.0
        %1451 = vmatpush2.msra.mxu0 0.0
        %1452 = vmatprep.subr.mxu0 0.0
        %1453 = vmatpush2.msra.mxu0 0.0
        %1454 = vmatprep.subr.mxu0 0.0
        %1455 = vmatpush2.msra.mxu0 0.0
        %1456 = vmatprep.subr.mxu0 0.0
        %1457 = vmatpush2.msra.mxu0 0.0
        %1458 = vmatprep.subr.mxu0 0.0
        %1459 = vmatpush2.msra.mxu0 0.0
        %1460 = vmatprep.subr.mxu0 0.0
        %1461 = vmatpush2.msra.mxu0 0.0
        %1462 = vmatprep.subr.mxu0 0.0
        %1463 = vmatpush2.msra.mxu0 0.0
        %1464 = vmatprep.subr.mxu0 0.0
        %1465 = vmatpush2.msra.mxu0 0.0
        %1466 = vmatprep.subr.mxu0 0.0
        %1467 = vmatpush2.msra.mxu0 0.0
        %1468 = vmatprep.subr.mxu0 0.0
        %1469 = vmatpush2.msra.mxu0 0.0
        %1470 = vmatprep.subr.mxu0 0.0
        %1471 = vmatpush2.msra.mxu0 0.0
        %1472 = vmatprep.subr.mxu0 0.0
        %1473 = vmatpush2.msra.mxu0 0.0
        %1474 = vmatprep.subr.mxu0 0.0
        %1475 = vmatpush2.msra.mxu0 0.0
        %1476 = vmatprep.subr.mxu0 0.0
        %1477 = vmatpush2.msra.mxu0 0.0
        %1478 = vmatprep.mubr.f32.mxu0 0.0
        %1479 = vmatmul.mubr.f32.gmra.mxu0 %v1413
        %v1480 = vpop.f32.mrf.mxu0
        %v1481 = vadd.f32 0.0, %v1480
        %v1482 = vpop.f32.mrf.mxu0
        %1483 = vdwg.mxu0
        %v1484 = vmul.f32 %v1410, 0.00048828125
        %v1485 = vmul.f32 %v1481, 0.00048828125
        %v1486 = vmul.f32 %v1484, %v1484
        %v1487 = vsub.f32 %v1485, %v1486
        %v1488 = vld [vmem:[%s4] sm:$0x1]
        %v1489 = vadd.f32 %v1487, 1e-05
        %v1490 = vrsqrt.pop %v1489
        %v1491 = vmul.f32 %v1488, %v1490
        %v1492 = vld [vmem:[%s5] sm:$0x1]
        %v1493 = vmul.f32 %v1484, %v1491
        %v1494 = vsub.f32 %v1492, %v1493
        %s1495 = scalar_lea.vmem [#allocation2], %s371
        %v1496 = vld [vmem:[%s1495] sm:$0xff]
        %v1497 = vld [vmem:[%s1495 + $0x8] sm:$0xff]
        %v1498 = vld [vmem:[%s1495 + $0x10] sm:$0xff]
        %v1499 = vld [vmem:[%s1495 + $0x18] sm:$0xff]
        %v1500 = vld [vmem:[%s1495 + $0x20] sm:$0xff]
        %v1501 = vld [vmem:[%s1495 + $0x28] sm:$0xff]
        %v1502 = vld [vmem:[%s1495 + $0x30] sm:$0xff]
        %v1503 = vld [vmem:[%s1495 + $0x38] sm:$0xff]
        %v1504 = vld [vmem:[%s1495 + $0x40] sm:$0xff]
        %v1505 = vld [vmem:[%s1495 + $0x48] sm:$0xff]
        %v1506 = vld [vmem:[%s1495 + $0x50] sm:$0xff]
        %v1507 = vld [vmem:[%s1495 + $0x58] sm:$0xff]
        %v1508 = vld [vmem:[%s1495 + $0x60] sm:$0xff]
        %v1509 = vld [vmem:[%s1495 + $0x68] sm:$0xff]
        %v1510 = vld [vmem:[%s1495 + $0x70] sm:$0xff]
        %v1511 = vld [vmem:[%s1495 + $0x78] sm:$0xff]
        %v1513 = vlaneseq
        %v1514 = vshrl.u32 %v1513, 7
        %v1515 = vsub.s32 0, %v1514
        %v1516 = vrot.slane %v1491, %v1515
        %v1518 = vmul.f32 %v1496, %v1516
        %v1519 = vmul.f32 %v1497, %v1516
        %v1520 = vmul.f32 %v1498, %v1516
        %v1521 = vmul.f32 %v1499, %v1516
        %v1522 = vmul.f32 %v1500, %v1516
        %v1523 = vmul.f32 %v1501, %v1516
        %v1524 = vmul.f32 %v1502, %v1516
        %v1525 = vmul.f32 %v1503, %v1516
        %v1526 = vmul.f32 %v1504, %v1516
        %v1527 = vmul.f32 %v1505, %v1516
        %v1528 = vmul.f32 %v1506, %v1516
        %v1529 = vmul.f32 %v1507, %v1516
        %v1530 = vmul.f32 %v1508, %v1516
        %v1531 = vmul.f32 %v1509, %v1516
        %v1532 = vmul.f32 %v1510, %v1516
        %v1533 = vmul.f32 %v1511, %v1516
        %v1535 = vlaneseq
        %v1536 = vshrl.u32 %v1535, 7
        %v1537 = vsub.s32 0, %v1536
        %v1538 = vrot.slane %v1494, %v1537
        %v1540 = vadd.f32 %v1518, %v1538
        %v1541 = vadd.f32 %v1519, %v1538
        %v1542 = vadd.f32 %v1520, %v1538
        %v1543 = vadd.f32 %v1521, %v1538
        %v1544 = vadd.f32 %v1522, %v1538
        %v1545 = vadd.f32 %v1523, %v1538
        %v1546 = vadd.f32 %v1524, %v1538
        %v1547 = vadd.f32 %v1525, %v1538
        %v1548 = vadd.f32 %v1526, %v1538
        %v1549 = vadd.f32 %v1527, %v1538
        %v1550 = vadd.f32 %v1528, %v1538
        %v1551 = vadd.f32 %v1529, %v1538
        %v1552 = vadd.f32 %v1530, %v1538
        %v1553 = vadd.f32 %v1531, %v1538
        %v1554 = vadd.f32 %v1532, %v1538
        %v1555 = vadd.f32 %v1533, %v1538
        %v1556 = vmax.f32 %v1540, 0.0
        %v1557 = vmax.f32 %v1541, 0.0
        %v1558 = vmax.f32 %v1542, 0.0
        %v1559 = vmax.f32 %v1543, 0.0
        %v1560 = vmax.f32 %v1544, 0.0
        %v1561 = vmax.f32 %v1545, 0.0
        %v1562 = vmax.f32 %v1546, 0.0
        %v1563 = vmax.f32 %v1547, 0.0
        %v1564 = vmax.f32 %v1548, 0.0
        %v1565 = vmax.f32 %v1549, 0.0
        %v1566 = vmax.f32 %v1550, 0.0
        %v1567 = vmax.f32 %v1551, 0.0
        %v1568 = vmax.f32 %v1552, 0.0
        %v1569 = vmax.f32 %v1553, 0.0
        %v1570 = vmax.f32 %v1554, 0.0
        %v1571 = vmax.f32 %v1555, 0.0
        %v1572 = vpack.c.bf16 %v1557, %v1556
        %v1573 = vpack.c.bf16 %v1559, %v1558
        %v1574 = vpack.c.bf16 %v1561, %v1560
        %v1575 = vpack.c.bf16 %v1563, %v1562
        %v1576 = vpack.c.bf16 %v1565, %v1564
        %v1577 = vpack.c.bf16 %v1567, %v1566
        %v1578 = vpack.c.bf16 %v1569, %v1568
        %v1579 = vpack.c.bf16 %v1571, %v1570
        %v1580 = vld [vmem:[%s6] sm:$0xf]
        %v1581 = vld [vmem:[%s6 + $0x4] sm:$0xf]
        %v1582 = vld [vmem:[%s6 + $0x8] sm:$0xf]
        %v1583 = vld [vmem:[%s6 + $0xc] sm:$0xf]
        %v1584 = vld [vmem:[%s6 + $0x10] sm:$0xf]
        %v1585 = vld [vmem:[%s6 + $0x14] sm:$0xf]
        %v1586 = vld [vmem:[%s6 + $0x18] sm:$0xf]
        %v1587 = vld [vmem:[%s6 + $0x1c] sm:$0xf]
        %v1588 = vld [vmem:[%s6 + $0x20] sm:$0xf]
        %v1589 = vld [vmem:[%s6 + $0x24] sm:$0xf]
        %v1590 = vld [vmem:[%s6 + $0x28] sm:$0xf]
        %v1591 = vld [vmem:[%s6 + $0x2c] sm:$0xf]
        %v1592 = vld [vmem:[%s6 + $0x30] sm:$0xf]
        %v1593 = vld [vmem:[%s6 + $0x34] sm:$0xf]
        %v1594 = vld [vmem:[%s6 + $0x38] sm:$0xf]
        %v1595 = vld [vmem:[%s6 + $0x3c] sm:$0xf]
        %v1596 = vld [vmem:[%s7] sm:$0x1]
        %v1598 = vlaneseq
        %v1599 = vshrl.u32 %v1598, 7
        %v1600 = vsub.s32 0, %v1599
        %v1601 = vrot.slane %v1596, %v1600
        %v1619 = vunpack.c.l.b16 %v1580
        %v1620 = vunpack.c.l.b16 %v1581
        %v1621 = vunpack.c.l.b16 %v1582
        %v1622 = vunpack.c.l.b16 %v1583
        %v1623 = vunpack.c.l.b16 %v1584
        %v1624 = vunpack.c.l.b16 %v1585
        %v1625 = vunpack.c.l.b16 %v1586
        %v1626 = vunpack.c.l.b16 %v1587
        %v1627 = vunpack.c.l.b16 %v1588
        %v1628 = vunpack.c.l.b16 %v1589
        %v1629 = vunpack.c.l.b16 %v1590
        %v1630 = vunpack.c.l.b16 %v1591
        %v1631 = vunpack.c.l.b16 %v1592
        %v1632 = vunpack.c.l.b16 %v1593
        %v1633 = vunpack.c.l.b16 %v1594
        %v1634 = vunpack.c.l.b16 %v1595
        %v1635 = vpack.c.b16 %v1620, %v1619
        %v1636 = vpack.c.b16 %v1622, %v1621
        %v1637 = vpack.c.b16 %v1624, %v1623
        %v1638 = vpack.c.b16 %v1626, %v1625
        %v1639 = vpack.c.b16 %v1628, %v1627
        %v1640 = vpack.c.b16 %v1630, %v1629
        %v1641 = vpack.c.b16 %v1632, %v1631
        %v1642 = vpack.c.b16 %v1634, %v1633
        %1651 = vmatprep.subr.bf16.mxu0 0
        %1652 = vmatpush1.bf16.msra.mxu0 %v1642
        %1653 = vmatprep.subr.bf16.mxu0 0
        %1654 = vmatpush1.bf16.msra.mxu0 %v1641
        %1655 = vmatprep.subr.bf16.mxu0 0
        %1656 = vmatpush1.bf16.msra.mxu0 %v1640
        %1657 = vmatprep.subr.bf16.mxu0 0
        %1658 = vmatpush1.bf16.msra.mxu0 %v1639
        %1659 = vmatprep.subr.bf16.mxu0 0
        %1660 = vmatpush1.bf16.msra.mxu0 %v1638
        %1661 = vmatprep.subr.bf16.mxu0 0
        %1662 = vmatpush1.bf16.msra.mxu0 %v1637
        %1663 = vmatprep.subr.bf16.mxu0 0
        %1664 = vmatpush1.bf16.msra.mxu0 %v1636
        %1665 = vmatprep.subr.bf16.mxu0 0
        %1666 = vmatpush1.bf16.msra.mxu0 %v1635
        %1667 = vmatprep.subr.bf16.mxu0 0
        %1668 = vmatpush2.bf16.msra.mxu0 0
        %1669 = vmatprep.subr.bf16.mxu0 0
        %1670 = vmatpush2.bf16.msra.mxu0 0
        %1671 = vmatprep.subr.bf16.mxu0 0
        %1672 = vmatpush2.bf16.msra.mxu0 0
        %1673 = vmatprep.subr.bf16.mxu0 0
        %1674 = vmatpush2.bf16.msra.mxu0 0
        %1675 = vmatprep.subr.bf16.mxu0 0
        %1676 = vmatpush2.bf16.msra.mxu0 0
        %1677 = vmatprep.subr.bf16.mxu0 0
        %1678 = vmatpush2.bf16.msra.mxu0 0
        %1679 = vmatprep.subr.bf16.mxu0 0
        %1680 = vmatpush2.bf16.msra.mxu0 0
        %1681 = vmatprep.subr.bf16.mxu0 0
        %1682 = vmatpush2.bf16.msra.mxu0 0
        %1683 = vmatprep.mubr.bf16.mxu0 0
        %1684 = vmatmul.mubr.bf16.gmra.mxu0 %v1572
        %v1685 = vpop.f32.mrf.mxu0
        %v1686 = vadd.f32 %v1601, %v1685
        %v1687 = vpop.f32.mrf.mxu0
        %v1688 = vpop.f32.mrf.mxu0
        %v1689 = vadd.f32 %v1601, %v1688
        %v1690 = vpop.f32.mrf.mxu0
        %1691 = vmatprep.mubr.bf16.mxu0 0
        %1692 = vmatmul.mubr.bf16.gmra.mxu0 %v1573
        %v1693 = vpop.f32.mrf.mxu0
        %v1694 = vadd.f32 %v1601, %v1693
        %v1695 = vpop.f32.mrf.mxu0
        %v1696 = vpop.f32.mrf.mxu0
        %v1697 = vadd.f32 %v1601, %v1696
        %v1698 = vpop.f32.mrf.mxu0
        %1699 = vmatprep.mubr.bf16.mxu0 0
        %1700 = vmatmul.mubr.bf16.gmra.mxu0 %v1574
        %v1701 = vpop.f32.mrf.mxu0
        %v1702 = vadd.f32 %v1601, %v1701
        %v1703 = vpop.f32.mrf.mxu0
        %v1704 = vpop.f32.mrf.mxu0
        %v1705 = vadd.f32 %v1601, %v1704
        %v1706 = vpop.f32.mrf.mxu0
        %1707 = vmatprep.mubr.bf16.mxu0 0
        %1708 = vmatmul.mubr.bf16.gmra.mxu0 %v1575
        %v1709 = vpop.f32.mrf.mxu0
        %v1710 = vadd.f32 %v1601, %v1709
        %v1711 = vpop.f32.mrf.mxu0
        %v1712 = vpop.f32.mrf.mxu0
        %v1713 = vadd.f32 %v1601, %v1712
        %v1714 = vpop.f32.mrf.mxu0
        %1715 = vmatprep.mubr.bf16.mxu0 0
        %1716 = vmatmul.mubr.bf16.gmra.mxu0 %v1576
        %v1717 = vpop.f32.mrf.mxu0
        %v1718 = vadd.f32 %v1601, %v1717
        %v1719 = vpop.f32.mrf.mxu0
        %v1720 = vpop.f32.mrf.mxu0
        %v1721 = vadd.f32 %v1601, %v1720
        %v1722 = vpop.f32.mrf.mxu0
        %1723 = vmatprep.mubr.bf16.mxu0 0
        %1724 = vmatmul.mubr.bf16.gmra.mxu0 %v1577
        %v1725 = vpop.f32.mrf.mxu0
        %v1726 = vadd.f32 %v1601, %v1725
        %v1727 = vpop.f32.mrf.mxu0
        %v1728 = vpop.f32.mrf.mxu0
        %v1729 = vadd.f32 %v1601, %v1728
        %v1730 = vpop.f32.mrf.mxu0
        %1731 = vmatprep.mubr.bf16.mxu0 0
        %1732 = vmatmul.mubr.bf16.gmra.mxu0 %v1578
        %v1733 = vpop.f32.mrf.mxu0
        %v1734 = vadd.f32 %v1601, %v1733
        %v1735 = vpop.f32.mrf.mxu0
        %v1736 = vpop.f32.mrf.mxu0
        %v1737 = vadd.f32 %v1601, %v1736
        %v1738 = vpop.f32.mrf.mxu0
        %1739 = vmatprep.mubr.bf16.mxu0 0
        %1740 = vmatmul.mubr.bf16.gmra.mxu0 %v1579
        %v1741 = vpop.f32.mrf.mxu0
        %v1742 = vadd.f32 %v1601, %v1741
        %v1743 = vpop.f32.mrf.mxu0
        %v1744 = vpop.f32.mrf.mxu0
        %v1745 = vadd.f32 %v1601, %v1744
        %v1746 = vpop.f32.mrf.mxu0
        %1747 = vdwg.mxu0
        %1748 = vmax.xlane.f32.xlu0 %v1686
        %v1749 = vpop.xlane.xlu0 %1748
        %1750 = vmax.xlane.f32.xlu0 %v1689
        %v1751 = vpop.xlane.xlu0 %1750
        %1752 = vmax.xlane.f32.xlu0 %v1694
        %v1753 = vpop.xlane.xlu0 %1752
        %1754 = vmax.xlane.f32.xlu0 %v1697
        %v1755 = vpop.xlane.xlu0 %1754
        %1756 = vmax.xlane.f32.xlu0 %v1702
        %v1757 = vpop.xlane.xlu0 %1756
        %1758 = vmax.xlane.f32.xlu0 %v1705
        %v1759 = vpop.xlane.xlu0 %1758
        %1760 = vmax.xlane.f32.xlu0 %v1710
        %v1761 = vpop.xlane.xlu0 %1760
        %1762 = vmax.xlane.f32.xlu0 %v1713
        %v1763 = vpop.xlane.xlu0 %1762
        %1764 = vmax.xlane.f32.xlu0 %v1718
        %v1765 = vpop.xlane.xlu0 %1764
        %1766 = vmax.xlane.f32.xlu0 %v1721
        %v1767 = vpop.xlane.xlu0 %1766
        %1768 = vmax.xlane.f32.xlu0 %v1726
        %v1769 = vpop.xlane.xlu0 %1768
        %1770 = vmax.xlane.f32.xlu0 %v1729
        %v1771 = vpop.xlane.xlu0 %1770
        %1772 = vmax.xlane.f32.xlu0 %v1734
        %v1773 = vpop.xlane.xlu0 %1772
        %1774 = vmax.xlane.f32.xlu0 %v1737
        %v1775 = vpop.xlane.xlu0 %1774
        %1776 = vmax.xlane.f32.xlu0 %v1742
        %v1777 = vpop.xlane.xlu0 %1776
        %1778 = vmax.xlane.f32.xlu0 %v1745
        %v1779 = vpop.xlane.xlu0 %1778
        %v1780 = vsub.f32 %v1686, %v1749
        %v1781 = vsub.f32 %v1689, %v1751
        %v1782 = vsub.f32 %v1694, %v1753
        %v1783 = vsub.f32 %v1697, %v1755
        %v1784 = vsub.f32 %v1702, %v1757
        %v1785 = vsub.f32 %v1705, %v1759
        %v1786 = vsub.f32 %v1710, %v1761
        %v1787 = vsub.f32 %v1713, %v1763
        %v1788 = vsub.f32 %v1718, %v1765
        %v1789 = vsub.f32 %v1721, %v1767
        %v1790 = vsub.f32 %v1726, %v1769
        %v1791 = vsub.f32 %v1729, %v1771
        %v1792 = vsub.f32 %v1734, %v1773
        %v1793 = vsub.f32 %v1737, %v1775
        %v1794 = vsub.f32 %v1742, %v1777
        %v1795 = vsub.f32 %v1745, %v1779
        %v1796 = vmul.f32 %v1780, 1.442695
        %v1797 = vpow.pop %v1796
        %v1798 = vmul.f32 %v1781, 1.442695
        %v1799 = vpow.pop %v1798
        %v1800 = vmul.f32 %v1782, 1.442695
        %v1801 = vpow.pop %v1800
        %v1802 = vmul.f32 %v1783, 1.442695
        %v1803 = vpow.pop %v1802
        %v1804 = vmul.f32 %v1784, 1.442695
        %v1805 = vpow.pop %v1804
        %v1806 = vmul.f32 %v1785, 1.442695
        %v1807 = vpow.pop %v1806
        %v1808 = vmul.f32 %v1786, 1.442695
        %v1809 = vpow.pop %v1808
        %v1810 = vmul.f32 %v1787, 1.442695
        %v1811 = vpow.pop %v1810
        %v1812 = vmul.f32 %v1788, 1.442695
        %v1813 = vpow.pop %v1812
        %v1814 = vmul.f32 %v1789, 1.442695
        %v1815 = vpow.pop %v1814
        %v1816 = vmul.f32 %v1790, 1.442695
        %v1817 = vpow.pop %v1816
        %v1818 = vmul.f32 %v1791, 1.442695
        %v1819 = vpow.pop %v1818
        %v1820 = vmul.f32 %v1792, 1.442695
        %v1821 = vpow.pop %v1820
        %v1822 = vmul.f32 %v1793, 1.442695
        %v1823 = vpow.pop %v1822
        %v1824 = vmul.f32 %v1794, 1.442695
        %v1825 = vpow.pop %v1824
        %v1826 = vmul.f32 %v1795, 1.442695
        %v1827 = vpow.pop %v1826
        %v1828 = vld [vmem:[%s8] sm:$0xff]
        %v1829 = vld [vmem:[%s8 + $0x8] sm:$0xff]
        %v1830 = vld [vmem:[%s8 + $0x10] sm:$0xff]
        %v1831 = vld [vmem:[%s8 + $0x18] sm:$0xff]
        %v1832 = vld [vmem:[%s8 + $0x20] sm:$0xff]
        %v1833 = vld [vmem:[%s8 + $0x28] sm:$0xff]
        %v1834 = vld [vmem:[%s8 + $0x30] sm:$0xff]
        %v1835 = vld [vmem:[%s8 + $0x38] sm:$0xff]
        %v1836 = vld [vmem:[%s8 + $0x40] sm:$0xff]
        %v1837 = vld [vmem:[%s8 + $0x48] sm:$0xff]
        %v1838 = vld [vmem:[%s8 + $0x50] sm:$0xff]
        %v1839 = vld [vmem:[%s8 + $0x58] sm:$0xff]
        %v1840 = vld [vmem:[%s8 + $0x60] sm:$0xff]
        %v1841 = vld [vmem:[%s8 + $0x68] sm:$0xff]
        %v1842 = vld [vmem:[%s8 + $0x70] sm:$0xff]
        %v1843 = vld [vmem:[%s8 + $0x78] sm:$0xff]
        %1844 = vmatprep.subr.mxu0 0.0
        %1845 = vmatpush1.msra.mxu0 %v1843
        %1846 = vmatprep.subr.mxu0 0.0
        %1847 = vmatpush1.msra.mxu0 %v1842
        %1848 = vmatprep.subr.mxu0 0.0
        %1849 = vmatpush1.msra.mxu0 %v1841
        %1850 = vmatprep.subr.mxu0 0.0
        %1851 = vmatpush1.msra.mxu0 %v1840
        %1852 = vmatprep.subr.mxu0 0.0
        %1853 = vmatpush1.msra.mxu0 %v1839
        %1854 = vmatprep.subr.mxu0 0.0
        %1855 = vmatpush1.msra.mxu0 %v1838
        %1856 = vmatprep.subr.mxu0 0.0
        %1857 = vmatpush1.msra.mxu0 %v1837
        %1858 = vmatprep.subr.mxu0 0.0
        %1859 = vmatpush1.msra.mxu0 %v1836
        %1860 = vmatprep.subr.mxu0 0.0
        %1861 = vmatpush1.msra.mxu0 %v1835
        %1862 = vmatprep.subr.mxu0 0.0
        %1863 = vmatpush1.msra.mxu0 %v1834
        %1864 = vmatprep.subr.mxu0 0.0
        %1865 = vmatpush1.msra.mxu0 %v1833
        %1866 = vmatprep.subr.mxu0 0.0
        %1867 = vmatpush1.msra.mxu0 %v1832
        %1868 = vmatprep.subr.mxu0 0.0
        %1869 = vmatpush1.msra.mxu0 %v1831
        %1870 = vmatprep.subr.mxu0 0.0
        %1871 = vmatpush1.msra.mxu0 %v1830
        %1872 = vmatprep.subr.mxu0 0.0
        %1873 = vmatpush1.msra.mxu0 %v1829
        %1874 = vmatprep.subr.mxu0 0.0
        %1875 = vmatpush1.msra.mxu0 %v1828
        %1876 = vmatprep.subr.mxu0 0.0
        %1877 = vmatpush2.msra.mxu0 0.0
        %1878 = vmatprep.subr.mxu0 0.0
        %1879 = vmatpush2.msra.mxu0 0.0
        %1880 = vmatprep.subr.mxu0 0.0
        %1881 = vmatpush2.msra.mxu0 0.0
        %1882 = vmatprep.subr.mxu0 0.0
        %1883 = vmatpush2.msra.mxu0 0.0
        %1884 = vmatprep.subr.mxu0 0.0
        %1885 = vmatpush2.msra.mxu0 0.0
        %1886 = vmatprep.subr.mxu0 0.0
        %1887 = vmatpush2.msra.mxu0 0.0
        %1888 = vmatprep.subr.mxu0 0.0
        %1889 = vmatpush2.msra.mxu0 0.0
        %1890 = vmatprep.subr.mxu0 0.0
        %1891 = vmatpush2.msra.mxu0 0.0
        %1892 = vmatprep.subr.mxu0 0.0
        %1893 = vmatpush2.msra.mxu0 0.0
        %1894 = vmatprep.subr.mxu0 0.0
        %1895 = vmatpush2.msra.mxu0 0.0
        %1896 = vmatprep.subr.mxu0 0.0
        %1897 = vmatpush2.msra.mxu0 0.0
        %1898 = vmatprep.subr.mxu0 0.0
        %1899 = vmatpush2.msra.mxu0 0.0
        %1900 = vmatprep.subr.mxu0 0.0
        %1901 = vmatpush2.msra.mxu0 0.0
        %1902 = vmatprep.subr.mxu0 0.0
        %1903 = vmatpush2.msra.mxu0 0.0
        %1904 = vmatprep.subr.mxu0 0.0
        %1905 = vmatpush2.msra.mxu0 0.0
        %1906 = vmatprep.subr.mxu0 0.0
        %1907 = vmatpush2.msra.mxu0 0.0
        %1908 = vmatprep.mubr.f32.mxu0 0.0
        %1909 = vmatmul.mubr.f32.gmra.mxu0 %v1797
        %v1910 = vpop.f32.mrf.mxu0
        %v1911 = vadd.f32 0.0, %v1910
        %v1912 = vpop.f32.mrf.mxu0
        %1913 = vmatprep.mubr.f32.mxu0 0.0
        %1914 = vmatmul.mubr.f32.gmra.mxu0 %v1799
        %v1915 = vpop.f32.mrf.mxu0
        %v1916 = vadd.f32 0.0, %v1915
        %v1917 = vpop.f32.mrf.mxu0
        %1918 = vmatprep.mubr.f32.mxu0 0.0
        %1919 = vmatmul.mubr.f32.gmra.mxu0 %v1801
        %v1920 = vpop.f32.mrf.mxu0
        %v1921 = vadd.f32 0.0, %v1920
        %v1922 = vpop.f32.mrf.mxu0
        %1923 = vmatprep.mubr.f32.mxu0 0.0
        %1924 = vmatmul.mubr.f32.gmra.mxu0 %v1803
        %v1925 = vpop.f32.mrf.mxu0
        %v1926 = vadd.f32 0.0, %v1925
        %v1927 = vpop.f32.mrf.mxu0
        %1928 = vmatprep.mubr.f32.mxu0 0.0
        %1929 = vmatmul.mubr.f32.gmra.mxu0 %v1805
        %v1930 = vpop.f32.mrf.mxu0
        %v1931 = vadd.f32 0.0, %v1930
        %v1932 = vpop.f32.mrf.mxu0
        %1933 = vmatprep.mubr.f32.mxu0 0.0
        %1934 = vmatmul.mubr.f32.gmra.mxu0 %v1807
        %v1935 = vpop.f32.mrf.mxu0
        %v1936 = vadd.f32 0.0, %v1935
        %v1937 = vpop.f32.mrf.mxu0
        %1938 = vmatprep.mubr.f32.mxu0 0.0
        %1939 = vmatmul.mubr.f32.gmra.mxu0 %v1809
        %v1940 = vpop.f32.mrf.mxu0
        %v1941 = vadd.f32 0.0, %v1940
        %v1942 = vpop.f32.mrf.mxu0
        %1943 = vmatprep.mubr.f32.mxu0 0.0
        %1944 = vmatmul.mubr.f32.gmra.mxu0 %v1811
        %v1945 = vpop.f32.mrf.mxu0
        %v1946 = vadd.f32 0.0, %v1945
        %v1947 = vpop.f32.mrf.mxu0
        %1948 = vmatprep.mubr.f32.mxu0 0.0
        %1949 = vmatmul.mubr.f32.gmra.mxu0 %v1813
        %v1950 = vpop.f32.mrf.mxu0
        %v1951 = vadd.f32 0.0, %v1950
        %v1952 = vpop.f32.mrf.mxu0
        %1953 = vmatprep.mubr.f32.mxu0 0.0
        %1954 = vmatmul.mubr.f32.gmra.mxu0 %v1815
        %v1955 = vpop.f32.mrf.mxu0
        %v1956 = vadd.f32 0.0, %v1955
        %v1957 = vpop.f32.mrf.mxu0
        %1958 = vmatprep.mubr.f32.mxu0 0.0
        %1959 = vmatmul.mubr.f32.gmra.mxu0 %v1817
        %v1960 = vpop.f32.mrf.mxu0
        %v1961 = vadd.f32 0.0, %v1960
        %v1962 = vpop.f32.mrf.mxu0
        %1963 = vmatprep.mubr.f32.mxu0 0.0
        %1964 = vmatmul.mubr.f32.gmra.mxu0 %v1819
        %v1965 = vpop.f32.mrf.mxu0
        %v1966 = vadd.f32 0.0, %v1965
        %v1967 = vpop.f32.mrf.mxu0
        %1968 = vmatprep.mubr.f32.mxu0 0.0
        %1969 = vmatmul.mubr.f32.gmra.mxu0 %v1821
        %v1970 = vpop.f32.mrf.mxu0
        %v1971 = vadd.f32 0.0, %v1970
        %v1972 = vpop.f32.mrf.mxu0
        %1973 = vmatprep.mubr.f32.mxu0 0.0
        %1974 = vmatmul.mubr.f32.gmra.mxu0 %v1823
        %v1975 = vpop.f32.mrf.mxu0
        %v1976 = vadd.f32 0.0, %v1975
        %v1977 = vpop.f32.mrf.mxu0
        %1978 = vmatprep.mubr.f32.mxu0 0.0
        %1979 = vmatmul.mubr.f32.gmra.mxu0 %v1825
        %v1980 = vpop.f32.mrf.mxu0
        %v1981 = vadd.f32 0.0, %v1980
        %v1982 = vpop.f32.mrf.mxu0
        %1983 = vmatprep.mubr.f32.mxu0 0.0
        %1984 = vmatmul.mubr.f32.gmra.mxu0 %v1827
        %v1985 = vpop.f32.mrf.mxu0
        %v1986 = vadd.f32 0.0, %v1985
        %v1987 = vpop.f32.mrf.mxu0
        %1988 = vdwg.mxu0
        %v1989 = vrcp.pop %v1911
        %v1990 = vrcp.pop %v1916
        %v1991 = vrcp.pop %v1921
        %v1992 = vrcp.pop %v1926
        %v1993 = vrcp.pop %v1931
        %v1994 = vrcp.pop %v1936
        %v1995 = vrcp.pop %v1941
        %v1996 = vrcp.pop %v1946
        %v1997 = vrcp.pop %v1951
        %v1998 = vrcp.pop %v1956
        %v1999 = vrcp.pop %v1961
        %v2000 = vrcp.pop %v1966
        %v2001 = vrcp.pop %v1971
        %v2002 = vrcp.pop %v1976
        %v2003 = vrcp.pop %v1981
        %v2004 = vrcp.pop %v1986
        %v2005 = vmul.f32 %v1797, %v1989
        %v2006 = vmul.f32 %v1799, %v1990
        %v2007 = vmul.f32 %v1801, %v1991
        %v2008 = vmul.f32 %v1803, %v1992
        %v2009 = vmul.f32 %v1805, %v1993
        %v2010 = vmul.f32 %v1807, %v1994
        %v2011 = vmul.f32 %v1809, %v1995
        %v2012 = vmul.f32 %v1811, %v1996
        %v2013 = vmul.f32 %v1813, %v1997
        %v2014 = vmul.f32 %v1815, %v1998
        %v2015 = vmul.f32 %v1817, %v1999
        %v2016 = vmul.f32 %v1819, %v2000
        %v2017 = vmul.f32 %v1821, %v2001
        %v2018 = vmul.f32 %v1823, %v2002
        %v2019 = vmul.f32 %v1825, %v2003
        %v2020 = vmul.f32 %v1827, %v2004
        %2021 = vst [vmem:[%s367] sm:$0xff] %v2005
        %2022 = vst [vmem:[%s367 + $0x8] sm:$0xff] %v2006
        %2023 = vst [vmem:[%s367 + $0x10] sm:$0xff] %v2007
        %2024 = vst [vmem:[%s367 + $0x18] sm:$0xff] %v2008
        %2025 = vst [vmem:[%s367 + $0x20] sm:$0xff] %v2009
        %2026 = vst [vmem:[%s367 + $0x28] sm:$0xff] %v2010
        %2027 = vst [vmem:[%s367 + $0x30] sm:$0xff] %v2011
        %2028 = vst [vmem:[%s367 + $0x38] sm:$0xff] %v2012
        %2029 = vst [vmem:[%s367 + $0x40] sm:$0xff] %v2013
        %2030 = vst [vmem:[%s367 + $0x48] sm:$0xff] %v2014
        %2031 = vst [vmem:[%s367 + $0x50] sm:$0xff] %v2015
        %2032 = vst [vmem:[%s367 + $0x58] sm:$0xff] %v2016
        %2033 = vst [vmem:[%s367 + $0x60] sm:$0xff] %v2017
        %2034 = vst [vmem:[%s367 + $0x68] sm:$0xff] %v2018
        %2035 = vst [vmem:[%s367 + $0x70] sm:$0xff] %v2019
        %2036 = vst [vmem:[%s367 + $0x78] sm:$0xff] %v2020
      $region68: #{output_forward.1} parent=55 // pred_fallthru
        _
      %s2037 = smul.u32 %s24, %s25
      %s2038 = smul.u32 16, %s2037
      %p2039 = scmp.lt.s32.totalorder %s2038, 15
      %s2040 = scalar_select %p2039, %s2038, 15
      %s2041 = smul.addr %s2040, 8
      %s2042 = scalar_lea.vmem %s9, %s2041
      // Predicated region
      $region69: #{output_forward.1} parent=55 // pred_check
        %p2043 = pneg %p250
      $region70: #{output_forward.1} parent=55 // pred_check_branch
        %2045 = sbr.rel (%p2043) target = $region72
      $region71: #{output_forward.1} parent=55 // pred_region
        %s2046 = smul.u32 %s24, %s25
        %s2047 = smul.u32 16, %s2046
      $region72: #{output_forward.1} parent=55 // pred_fallthru
        _
    $region56: #{output_forward.1} parent=5 // pred_fallthru
      _
    %p2048 = scmp.le.s32.totalorder 2, %s15
    // Predicated region
    $region73: #{output_forward.1} parent=5 // pred_check
      %p2049 = pneg %p2048
    $region74: #{output_forward.1} parent=5 // pred_check_branch
      %2051 = sbr.rel (%p2049) target = $region76
    $region75: #{output_forward.1} parent=5 // pred_region
      %s2052 = ssub.s32 %s15, 2
      // Predicated region
      $region77: #{output_forward.1} parent=75 // pred_check
        %p2053 = pneg %p256
      $region78: #{output_forward.1} parent=75 // pred_check_branch
        %2055 = sbr.rel (%p2053) target = $region80
      $region79: #{output_forward.1} parent=75 // pred_region
        %s2056 = smul.u32 %s26, %s27
        %s2057 = smul.u32 16, %s2056
        %p2058 = scmp.lt.s32.totalorder %s2057, 15
        %s2059 = scalar_select %p2058, %s2057, 15
        %s2060 = smul.addr %s2059, 8
        %s2061 = scalar_lea.vmem %s9, %s2060
      $region80: #{output_forward.1} parent=75 // pred_fallthru
        _
    $region76: #{output_forward.1} parent=5 // pred_fallthru
      _
  $region6: #{output_forward.1} parent=0 // loop_footer
    %s19 = sadd.s32 1, %s15
  $region7: #{output_forward.1} parent=0 // loop_footer_branch
    %14 = sbr.rel target = $region3
  $region8: #{output_forward.1} parent=0 // loop_exit
    _

</llo_original>
